<compile_context>
chip_gen: v5e
topology: v5e:2x2
jax: 0.10.0
libtpu: 0.0.40
codegen_flags: <defaults>
</compile_context>

<pallas_src>
import jax
import jax.numpy as jnp
from jax.experimental import pallas as pl
from jax.experimental.pallas import tpu as pltpu


# ---------------------------------------------------------------------------
# Fused kernel: chunked input projection + sequential GRU recurrence.
# ---------------------------------------------------------------------------
def gru_fused_kernel(x_ref, wih_ref, whh_ref, bpre_ref, bhn_ref,
                     hseq_ref, gi_scratch, h_scratch):
    # x_ref:     (T_CHUNK, B_TILE, D)      bf16
    # wih_ref:   (D, 3H)                   bf16  (resident)
    # whh_ref:   (H, 3H)                   bf16  (resident)
    # bpre_ref:  (1, 3H)                   f32   (b_ih + b_hh[r,z] folded)
    # bhn_ref:   (1, H)                    f32   (b_hh "new" chunk)
    # hseq_ref:  (T_CHUNK, B_TILE, H)      x.dtype (output hidden states)
    # gi_scratch:(T_CHUNK, B_TILE, 3H)     f32   (fused input projection)
    # h_scratch: (B_TILE, H)               f32   (recurrent state, persists)
    t_idx = pl.program_id(1)

    @pl.when(t_idx == 0)
    def _():
        h_scratch[...] = jnp.zeros_like(h_scratch)

    n_steps, b_tile, d = x_ref.shape
    hdim = h_scratch.shape[1]

    # Fused input projection for the whole time chunk: one fat MXU matmul that
    # pipelines ahead of the serial loop and never touches HBM.
    x2d = x_ref[...].reshape(n_steps * b_tile, d)
    gi = jnp.dot(x2d, wih_ref[...], preferred_element_type=jnp.float32)
    gi_scratch[...] = (gi + bpre_ref[...]).reshape(n_steps, b_tile, 3 * hdim)

    # Hoist resident-weight load and bias broadcast out of the per-step loop
    # (JAX does not CSE broadcast_in_dim).
    whh = whh_ref[...]                                        # (H, 3H) bf16
    bhn = jnp.broadcast_to(bhn_ref[...], (b_tile, hdim))      # (B_TILE, H) f32

    def step(t, h_prev):
        g = gi_scratch[t]                                     # (B_TILE, 3H) f32
        gh = jnp.dot(h_prev.astype(jnp.bfloat16), whh,
                     preferred_element_type=jnp.float32)      # (B_TILE, 3H) f32
        # Lane-aligned gate slices (H is a multiple of 128).
        r = jax.nn.sigmoid(g[:, 0:hdim] + gh[:, 0:hdim])
        z = jax.nn.sigmoid(g[:, hdim:2 * hdim] + gh[:, hdim:2 * hdim])
        n = jnp.tanh(g[:, 2 * hdim:] + r * (gh[:, 2 * hdim:] + bhn))
        h_new = n + z * (h_prev - n)                          # == (1-z)*n + z*h
        hseq_ref[t] = h_new.astype(hseq_ref.dtype)            # lane-dense store
        return h_new

    h = jax.lax.fori_loop(0, n_steps, step, h_scratch[...], unroll=True)
    h_scratch[...] = h


# ---------------------------------------------------------------------------
# Wrapper
# ---------------------------------------------------------------------------
def _round_up(x, m):
    return (x + m - 1) // m * m


def gru_forward(x, w_ih, w_hh, b_ih, b_hh, *, t_chunk=16):
    """x: (T, B, D_in); w_ih: (D_in, 3H); w_hh: (H, 3H); b_*: (1, 3H).

    Gate order along the 3H axis is PyTorch's [reset | update | new].
    Returns (h_seq (T, B, H), h_last (B, H)).  Initial hidden state is zero.
    """
    T, B, D = x.shape
    H = w_hh.shape[0]
    assert w_ih.shape == (D, 3 * H)
    assert b_ih.shape == (1, 3 * H) and b_hh.shape == (1, 3 * H)

    f32, bf16 = jnp.float32, jnp.bfloat16

    # ----- tiling ------------------------------------------------------------
    H_pad = _round_up(H, 128)                 # lane-dense hidden dim
    B_pad = _round_up(B, 8)                   # sublane-aligned batch
    B_TILE = B_pad
    for cand in (256, 128, 64, 32, 16, 8):    # largest aligned tile that divides
        if B_pad % cand == 0:
            B_TILE = cand
            break
    # Prefer >= 2 batch tiles so the "parallel" axis can feed both v7x cores.
    if B_pad // B_TILE < 2 and B_pad % 16 == 0:
        B_TILE = B_pad // 2
    T_CHUNK = max(1, min(t_chunk, T))
    T_pad = _round_up(T, T_CHUNK)

    # ----- per-gate lane-aligned padding of weights / biases -----------------
    def pad_gate_cols(w):  # (rows, 3H) -> (rows, 3*H_pad), zero-padded per gate
        parts = [w[:, g * H:(g + 1) * H] for g in range(3)]
        parts = [jnp.pad(p, ((0, 0), (0, H_pad - H))) for p in parts]
        return jnp.concatenate(parts, axis=1)

    w_ih_p = pad_gate_cols(w_ih.astype(f32)).astype(bf16)               # (D, 3H_pad)
    w_hh_p = jnp.pad(pad_gate_cols(w_hh.astype(f32)),
                     ((0, H_pad - H), (0, 0))).astype(bf16)             # (H_pad, 3H_pad)
    b_ih_p = pad_gate_cols(b_ih.astype(f32))                            # (1, 3H_pad)
    b_hh_p = pad_gate_cols(b_hh.astype(f32))                            # (1, 3H_pad)
    # Fold b_hh's r/z chunks into the projection bias; keep its "new" chunk
    # separate (it is multiplied by r inside the recurrence).
    b_pre = b_ih_p.at[:, :2 * H_pad].add(b_hh_p[:, :2 * H_pad])         # (1, 3H_pad)
    b_hh_n = b_hh_p[:, 2 * H_pad:]                                      # (1, H_pad)

    # ----- inputs: cast to bf16 BEFORE padding (no f32 padded copy in HBM) ---
    x_p = jnp.pad(x.astype(bf16),
                  ((0, T_pad - T), (0, B_pad - B), (0, 0)))             # (T_pad, B_pad, D)

    nb = B_pad // B_TILE
    ntc = T_pad // T_CHUNK

    h_seq_p = pl.pallas_call(
        gru_fused_kernel,
        out_shape=jax.ShapeDtypeStruct((T_pad, B_pad, H_pad), x.dtype),
        grid_spec=pltpu.PrefetchScalarGridSpec(
            num_scalar_prefetch=0,
            grid=(nb, ntc),
            in_specs=[
                pl.BlockSpec((T_CHUNK, B_TILE, D), lambda b, t: (t, b, 0)),   # x chunk
                pl.BlockSpec((D, 3 * H_pad), lambda b, t: (0, 0)),            # W_ih (resident)
                pl.BlockSpec((H_pad, 3 * H_pad), lambda b, t: (0, 0)),        # W_hh (resident)
                pl.BlockSpec((1, 3 * H_pad), lambda b, t: (0, 0)),            # b_ih + b_hh[r,z]
                pl.BlockSpec((1, H_pad), lambda b, t: (0, 0)),                # b_hh[n]
            ],
            out_specs=pl.BlockSpec((T_CHUNK, B_TILE, H_pad),
                                   lambda b, t: (t, b, 0)),
            scratch_shapes=[
                pltpu.VMEM((T_CHUNK, B_TILE, 3 * H_pad), f32),   # fused gi chunk
                pltpu.VMEM((B_TILE, H_pad), f32),                # recurrent state
            ],
        ),
        compiler_params=pltpu.CompilerParams(
            # batch tiles are independent (megacore); time chunks stay serial
            dimension_semantics=("parallel", "arbitrary"),
            vmem_limit_bytes=64 * 1024 * 1024),
    )(x_p, w_ih_p, w_hh_p, b_pre, b_hh_n)

    h_seq = h_seq_p[:T, :B, :H]
    h_last = h_seq[-1]
    return h_seq, h_last


# ---------------------------------------------------------------------------
# Pure-JAX reference (lax.scan) mirroring the kernel's bf16-operand / f32-acc
# numerics so the comparison is tight.
# ---------------------------------------------------------------------------
def gru_reference(x, w_ih, w_hh, b_ih, b_hh):
    H = w_hh.shape[0]
    wih = w_ih.astype(jnp.bfloat16)
    whh = w_hh.astype(jnp.bfloat16)

    def step(h_prev, x_t):
        gi = jnp.dot(x_t.astype(jnp.bfloat16), wih,
                     preferred_element_type=jnp.float32) + b_ih
        gh = jnp.dot(h_prev.astype(jnp.bfloat16), whh,
                     preferred_element_type=jnp.float32) + b_hh
        i_r, i_z, i_n = gi[:, :H], gi[:, H:2 * H], gi[:, 2 * H:]
        h_r, h_z, h_n = gh[:, :H], gh[:, H:2 * H], gh[:, 2 * H:]
        r = jax.nn.sigmoid(i_r + h_r)
        z = jax.nn.sigmoid(i_z + h_z)
        n = jnp.tanh(i_n + r * h_n)
        h_new = (1.0 - z) * n + z * h_prev
        return h_new, h_new

    h0 = jnp.zeros((x.shape[1], H), jnp.float32)
    h_last, h_seq = jax.lax.scan(step, h0, x.astype(jnp.float32))
    return h_seq.astype(x.dtype), h_last.astype(x.dtype)


if __name__ == "__main__":
    # Small, deterministic problem: seq=8, batch=2, input=32, hidden=32.
    T, B, D, H = 8, 2, 32, 32
    key = jax.random.PRNGKey(0)
    kx, k1, k2, k3, k4 = jax.random.split(key, 5)

    bound = 1.0 / jnp.sqrt(jnp.float32(H))  # nn.GRU default init range
    x = jax.random.normal(kx, (T, B, D), dtype=jnp.float32)
    w_ih = jax.random.uniform(k1, (D, 3 * H), jnp.float32, -bound, bound)
    w_hh = jax.random.uniform(k2, (H, 3 * H), jnp.float32, -bound, bound)
    b_ih = jax.random.uniform(k3, (1, 3 * H), jnp.float32, -bound, bound)
    b_hh = jax.random.uniform(k4, (1, 3 * H), jnp.float32, -bound, bound)

    h_seq, h_last = jax.block_until_ready(gru_forward(x, w_ih, w_hh, b_ih, b_hh))

    ref_seq, ref_last = gru_reference(x, w_ih, w_hh, b_ih, b_hh)
    assert jnp.allclose(h_seq, ref_seq, atol=2e-3, rtol=2e-3)
    assert jnp.allclose(h_last, ref_last, atol=2e-3, rtol=2e-3)

    print("KERNEL_OK")
</pallas_src>

<mosaic_0001>
module attributes {stable_mosaic.version = 11 : i64} {
  func.func @gru_fused_kernel(%arg0: i32, %arg1: i32, %arg2: memref<8x8x32xbf16, #tpu.memory_space<vmem>>, %arg3: memref<32x384xbf16, #tpu.memory_space<vmem>>, %arg4: memref<128x384xbf16, #tpu.memory_space<vmem>>, %arg5: memref<1x384xf32, #tpu.memory_space<vmem>>, %arg6: memref<1x128xf32, #tpu.memory_space<vmem>>, %arg7: memref<8x8x128xf32, #tpu.memory_space<vmem>>, %arg8: memref<8x8x384xf32, #tpu.memory_space<vmem>>, %arg9: memref<8x128xf32, #tpu.memory_space<vmem>>) attributes {dimension_semantics = [#tpu.dimension_semantics<parallel>, #tpu.dimension_semantics<arbitrary>], iteration_bounds = array<i64: 1, 1>, scalar_prefetch = 0 : i64, scratch_operands = 2 : i64, tpu.core_type = #tpu.core_type<tc>, window_params = [{transform_indices = @transform_0, window_bounds = array<i64: 8, 8, 32>}, {pipeline_mode = #tpu.pipeline_mode<synchronous>, transform_indices = @transform_1, window_bounds = array<i64: 32, 384>}, {pipeline_mode = #tpu.pipeline_mode<synchronous>, transform_indices = @transform_2, window_bounds = array<i64: 128, 384>}, {pipeline_mode = #tpu.pipeline_mode<synchronous>, transform_indices = @transform_3, window_bounds = array<i64: 1, 384>}, {pipeline_mode = #tpu.pipeline_mode<synchronous>, transform_indices = @transform_4, window_bounds = array<i64: 1, 128>}, {transform_indices = @transform_5, window_bounds = array<i64: 8, 8, 128>}]} {
    %c0_i32 = arith.constant 0 : i32
    %0 = arith.cmpi eq, %arg1, %c0_i32 : i32
    %1 = arith.extui %0 : i1 to i32
    %c0_i32_0 = arith.constant 0 : i32
    %2 = arith.cmpi ne, %1, %c0_i32_0 : i32
    scf.if %2 {
      %cst_75 = arith.constant 0.000000e+00 : f32
      %290 = vector.broadcast %cst_75 : f32 to vector<8x128xf32>
      %c0_76 = arith.constant 0 : index
      %c0_77 = arith.constant 0 : index
      %291 = vector.load %arg9[%c0_76, %c0_77] : memref<8x128xf32, #tpu.memory_space<vmem>>, vector<8x128xf32>
      tpu.vector_store %arg9[%c0_76, %c0_77], %290 {strides = array<i32>} : memref<8x128xf32, #tpu.memory_space<vmem>>, vector<8x128xf32>,
    } else {
    }
    %c0 = arith.constant 0 : index
    %c0_1 = arith.constant 0 : index
    %c0_2 = arith.constant 0 : index
    %3 = vector.load %arg2[%c0, %c0_1, %c0_2] : memref<8x8x32xbf16, #tpu.memory_space<vmem>>, vector<8x8x32xbf16>
    %4 = vector.shape_cast %3 : vector<8x8x32xbf16> to vector<64x32xbf16>
    %c0_3 = arith.constant 0 : index
    %c0_4 = arith.constant 0 : index
    %5 = vector.load %arg3[%c0_3, %c0_4] : memref<32x384xbf16, #tpu.memory_space<vmem>>, vector<32x384xbf16>
    %cst = arith.constant dense<0.000000e+00> : vector<64x384xf32>
    %6 = tpu.matmul %4, %5, %cst {dimension_numbers = #tpu.dot_dimension_numbers<[1], [0], [0], [1], [0, 0, 1, 1], [], []>} : vector<64x32xbf16>, vector<32x384xbf16>, vector<64x384xf32> -> vector<64x384xf32>
    %c0_5 = arith.constant 0 : index
    %c0_6 = arith.constant 0 : index
    %7 = vector.load %arg5[%c0_5, %c0_6] : memref<1x384xf32, #tpu.memory_space<vmem>>, vector<1x384xf32>
    %8 = vector.broadcast %7 : vector<1x384xf32> to vector<64x384xf32>
    %9 = arith.addf %6, %8 : vector<64x384xf32>
    %10 = vector.shape_cast %9 : vector<64x384xf32> to vector<8x8x384xf32>
    %c0_7 = arith.constant 0 : index
    %c0_8 = arith.constant 0 : index
    %c0_9 = arith.constant 0 : index
    %11 = vector.load %arg8[%c0_7, %c0_8, %c0_9] : memref<8x8x384xf32, #tpu.memory_space<vmem>>, vector<8x8x384xf32>
    tpu.vector_store %arg8[%c0_7, %c0_8, %c0_9], %10 {strides = array<i32>} : memref<8x8x384xf32, #tpu.memory_space<vmem>>, vector<8x8x384xf32>,
    %c0_10 = arith.constant 0 : index
    %c0_11 = arith.constant 0 : index
    %12 = vector.load %arg4[%c0_10, %c0_11] : memref<128x384xbf16, #tpu.memory_space<vmem>>, vector<128x384xbf16>
    %c0_12 = arith.constant 0 : index
    %c0_13 = arith.constant 0 : index
    %13 = vector.load %arg6[%c0_12, %c0_13] : memref<1x128xf32, #tpu.memory_space<vmem>>, vector<1x128xf32>
    %14 = vector.shape_cast %13 : vector<1x128xf32> to vector<1x128xf32>
    %15 = vector.broadcast %14 : vector<1x128xf32> to vector<8x128xf32>
    %c0_14 = arith.constant 0 : index
    %c0_15 = arith.constant 0 : index
    %16 = vector.load %arg9[%c0_14, %c0_15] : memref<8x128xf32, #tpu.memory_space<vmem>>, vector<8x128xf32>
    %c0_i32_16 = arith.constant 0 : i32
    %17 = arith.index_cast %c0_i32_16 : i32 to index
    %c0_17 = arith.constant 0 : index
    %c0_18 = arith.constant 0 : index
    %18 = vector.load %arg8[%17, %c0_17, %c0_18] : memref<8x8x384xf32, #tpu.memory_space<vmem>>, vector<1x8x384xf32>
    %19 = vector.shape_cast %18 : vector<1x8x384xf32> to vector<8x384xf32>
    %20 = arith.truncf %16 : vector<8x128xf32> to vector<8x128xbf16>
    %cst_19 = arith.constant dense<0.000000e+00> : vector<8x384xf32>
    %21 = tpu.matmul %20, %12, %cst_19 {dimension_numbers = #tpu.dot_dimension_numbers<[1], [0], [0], [1], [0, 0, 1, 1], [], []>} : vector<8x128xbf16>, vector<128x384xbf16>, vector<8x384xf32> -> vector<8x384xf32>
    %22 = vector.extract_strided_slice %19 {offsets = [0, 0], sizes = [8, 128], strides = [1, 1]} : vector<8x384xf32> to vector<8x128xf32>
    %23 = vector.extract_strided_slice %21 {offsets = [0, 0], sizes = [8, 128], strides = [1, 1]} : vector<8x384xf32> to vector<8x128xf32>
    %24 = arith.addf %22, %23 : vector<8x128xf32>
    %25 = arith.negf %24 : vector<8x128xf32>
    %26 = math.exp %25 : vector<8x128xf32>
    %cst_20 = arith.constant 1.000000e+00 : f32
    %27 = vector.broadcast %cst_20 : f32 to vector<8x128xf32>
    %28 = arith.addf %27, %26 : vector<8x128xf32>
    %29 = arith.divf %27, %28 : vector<8x128xf32>
    %30 = vector.extract_strided_slice %19 {offsets = [0, 128], sizes = [8, 128], strides = [1, 1]} : vector<8x384xf32> to vector<8x128xf32>
    %31 = vector.extract_strided_slice %21 {offsets = [0, 128], sizes = [8, 128], strides = [1, 1]} : vector<8x384xf32> to vector<8x128xf32>
    %32 = arith.addf %30, %31 : vector<8x128xf32>
    %33 = arith.negf %32 : vector<8x128xf32>
    %34 = math.exp %33 : vector<8x128xf32>
    %cst_21 = arith.constant 1.000000e+00 : f32
    %35 = vector.broadcast %cst_21 : f32 to vector<8x128xf32>
    %36 = arith.addf %35, %34 : vector<8x128xf32>
    %37 = arith.divf %35, %36 : vector<8x128xf32>
    %38 = vector.extract_strided_slice %19 {offsets = [0, 256], sizes = [8, 128], strides = [1, 1]} : vector<8x384xf32> to vector<8x128xf32>
    %39 = vector.extract_strided_slice %21 {offsets = [0, 256], sizes = [8, 128], strides = [1, 1]} : vector<8x384xf32> to vector<8x128xf32>
    %40 = arith.addf %39, %15 : vector<8x128xf32>
    %41 = arith.mulf %29, %40 : vector<8x128xf32>
    %42 = arith.addf %38, %41 : vector<8x128xf32>
    %43 = math.tanh %42 : vector<8x128xf32>
    %44 = arith.subf %16, %43 : vector<8x128xf32>
    %45 = arith.mulf %37, %44 : vector<8x128xf32>
    %46 = arith.addf %43, %45 : vector<8x128xf32>
    %47 = arith.index_cast %c0_i32_16 : i32 to index
    %c0_22 = arith.constant 0 : index
    %c0_23 = arith.constant 0 : index
    %48 = vector.load %arg7[%47, %c0_22, %c0_23] : memref<8x8x128xf32, #tpu.memory_space<vmem>>, vector<1x8x128xf32>
    %49 = vector.shape_cast %48 : vector<1x8x128xf32> to vector<8x128xf32>
    %50 = vector.shape_cast %46 : vector<8x128xf32> to vector<1x8x128xf32>
    tpu.vector_store %arg7[%47, %c0_22, %c0_23], %50 {strides = array<i32>} : memref<8x8x128xf32, #tpu.memory_space<vmem>>, vector<1x8x128xf32>,
    %c1_i32 = arith.constant 1 : i32
    %51 = arith.index_cast %c1_i32 : i32 to index
    %c0_24 = arith.constant 0 : index
    %c0_25 = arith.constant 0 : index
    %52 = vector.load %arg8[%51, %c0_24, %c0_25] : memref<8x8x384xf32, #tpu.memory_space<vmem>>, vector<1x8x384xf32>
    %53 = vector.shape_cast %52 : vector<1x8x384xf32> to vector<8x384xf32>
    %54 = arith.truncf %46 : vector<8x128xf32> to vector<8x128xbf16>
    %cst_26 = arith.constant dense<0.000000e+00> : vector<8x384xf32>
    %55 = tpu.matmul %54, %12, %cst_26 {dimension_numbers = #tpu.dot_dimension_numbers<[1], [0], [0], [1], [0, 0, 1, 1], [], []>} : vector<8x128xbf16>, vector<128x384xbf16>, vector<8x384xf32> -> vector<8x384xf32>
    %56 = vector.extract_strided_slice %53 {offsets = [0, 0], sizes = [8, 128], strides = [1, 1]} : vector<8x384xf32> to vector<8x128xf32>
    %57 = vector.extract_strided_slice %55 {offsets = [0, 0], sizes = [8, 128], strides = [1, 1]} : vector<8x384xf32> to vector<8x128xf32>
    %58 = arith.addf %56, %57 : vector<8x128xf32>
    %59 = arith.negf %58 : vector<8x128xf32>
    %60 = math.exp %59 : vector<8x128xf32>
    %cst_27 = arith.constant 1.000000e+00 : f32
    %61 = vector.broadcast %cst_27 : f32 to vector<8x128xf32>
    %62 = arith.addf %61, %60 : vector<8x128xf32>
    %63 = arith.divf %61, %62 : vector<8x128xf32>
    %64 = vector.extract_strided_slice %53 {offsets = [0, 128], sizes = [8, 128], strides = [1, 1]} : vector<8x384xf32> to vector<8x128xf32>
    %65 = vector.extract_strided_slice %55 {offsets = [0, 128], sizes = [8, 128], strides = [1, 1]} : vector<8x384xf32> to vector<8x128xf32>
    %66 = arith.addf %64, %65 : vector<8x128xf32>
    %67 = arith.negf %66 : vector<8x128xf32>
    %68 = math.exp %67 : vector<8x128xf32>
    %cst_28 = arith.constant 1.000000e+00 : f32
    %69 = vector.broadcast %cst_28 : f32 to vector<8x128xf32>
    %70 = arith.addf %69, %68 : vector<8x128xf32>
    %71 = arith.divf %69, %70 : vector<8x128xf32>
    %72 = vector.extract_strided_slice %53 {offsets = [0, 256], sizes = [8, 128], strides = [1, 1]} : vector<8x384xf32> to vector<8x128xf32>
    %73 = vector.extract_strided_slice %55 {offsets = [0, 256], sizes = [8, 128], strides = [1, 1]} : vector<8x384xf32> to vector<8x128xf32>
    %74 = arith.addf %73, %15 : vector<8x128xf32>
    %75 = arith.mulf %63, %74 : vector<8x128xf32>
    %76 = arith.addf %72, %75 : vector<8x128xf32>
    %77 = math.tanh %76 : vector<8x128xf32>
    %78 = arith.subf %46, %77 : vector<8x128xf32>
    %79 = arith.mulf %71, %78 : vector<8x128xf32>
    %80 = arith.addf %77, %79 : vector<8x128xf32>
    %81 = arith.index_cast %c1_i32 : i32 to index
    %c0_29 = arith.constant 0 : index
    %c0_30 = arith.constant 0 : index
    %82 = vector.load %arg7[%81, %c0_29, %c0_30] : memref<8x8x128xf32, #tpu.memory_space<vmem>>, vector<1x8x128xf32>
    %83 = vector.shape_cast %82 : vector<1x8x128xf32> to vector<8x128xf32>
    %84 = vector.shape_cast %80 : vector<8x128xf32> to vector<1x8x128xf32>
    tpu.vector_store %arg7[%81, %c0_29, %c0_30], %84 {strides = array<i32>} : memref<8x8x128xf32, #tpu.memory_space<vmem>>, vector<1x8x128xf32>,
    %c2_i32 = arith.constant 2 : i32
    %85 = arith.index_cast %c2_i32 : i32 to index
    %c0_31 = arith.constant 0 : index
    %c0_32 = arith.constant 0 : index
    %86 = vector.load %arg8[%85, %c0_31, %c0_32] : memref<8x8x384xf32, #tpu.memory_space<vmem>>, vector<1x8x384xf32>
    %87 = vector.shape_cast %86 : vector<1x8x384xf32> to vector<8x384xf32>
    %88 = arith.truncf %80 : vector<8x128xf32> to vector<8x128xbf16>
    %cst_33 = arith.constant dense<0.000000e+00> : vector<8x384xf32>
    %89 = tpu.matmul %88, %12, %cst_33 {dimension_numbers = #tpu.dot_dimension_numbers<[1], [0], [0], [1], [0, 0, 1, 1], [], []>} : vector<8x128xbf16>, vector<128x384xbf16>, vector<8x384xf32> -> vector<8x384xf32>
    %90 = vector.extract_strided_slice %87 {offsets = [0, 0], sizes = [8, 128], strides = [1, 1]} : vector<8x384xf32> to vector<8x128xf32>
    %91 = vector.extract_strided_slice %89 {offsets = [0, 0], sizes = [8, 128], strides = [1, 1]} : vector<8x384xf32> to vector<8x128xf32>
    %92 = arith.addf %90, %91 : vector<8x128xf32>
    %93 = arith.negf %92 : vector<8x128xf32>
    %94 = math.exp %93 : vector<8x128xf32>
    %cst_34 = arith.constant 1.000000e+00 : f32
    %95 = vector.broadcast %cst_34 : f32 to vector<8x128xf32>
    %96 = arith.addf %95, %94 : vector<8x128xf32>
    %97 = arith.divf %95, %96 : vector<8x128xf32>
    %98 = vector.extract_strided_slice %87 {offsets = [0, 128], sizes = [8, 128], strides = [1, 1]} : vector<8x384xf32> to vector<8x128xf32>
    %99 = vector.extract_strided_slice %89 {offsets = [0, 128], sizes = [8, 128], strides = [1, 1]} : vector<8x384xf32> to vector<8x128xf32>
    %100 = arith.addf %98, %99 : vector<8x128xf32>
    %101 = arith.negf %100 : vector<8x128xf32>
    %102 = math.exp %101 : vector<8x128xf32>
    %cst_35 = arith.constant 1.000000e+00 : f32
    %103 = vector.broadcast %cst_35 : f32 to vector<8x128xf32>
    %104 = arith.addf %103, %102 : vector<8x128xf32>
    %105 = arith.divf %103, %104 : vector<8x128xf32>
    %106 = vector.extract_strided_slice %87 {offsets = [0, 256], sizes = [8, 128], strides = [1, 1]} : vector<8x384xf32> to vector<8x128xf32>
    %107 = vector.extract_strided_slice %89 {offsets = [0, 256], sizes = [8, 128], strides = [1, 1]} : vector<8x384xf32> to vector<8x128xf32>
    %108 = arith.addf %107, %15 : vector<8x128xf32>
    %109 = arith.mulf %97, %108 : vector<8x128xf32>
    %110 = arith.addf %106, %109 : vector<8x128xf32>
    %111 = math.tanh %110 : vector<8x128xf32>
    %112 = arith.subf %80, %111 : vector<8x128xf32>
    %113 = arith.mulf %105, %112 : vector<8x128xf32>
    %114 = arith.addf %111, %113 : vector<8x128xf32>
    %115 = arith.index_cast %c2_i32 : i32 to index
    %c0_36 = arith.constant 0 : index
    %c0_37 = arith.constant 0 : index
    %116 = vector.load %arg7[%115, %c0_36, %c0_37] : memref<8x8x128xf32, #tpu.memory_space<vmem>>, vector<1x8x128xf32>
    %117 = vector.shape_cast %116 : vector<1x8x128xf32> to vector<8x128xf32>
    %118 = vector.shape_cast %114 : vector<8x128xf32> to vector<1x8x128xf32>
    tpu.vector_store %arg7[%115, %c0_36, %c0_37], %118 {strides = array<i32>} : memref<8x8x128xf32, #tpu.memory_space<vmem>>, vector<1x8x128xf32>,
    %c3_i32 = arith.constant 3 : i32
    %119 = arith.index_cast %c3_i32 : i32 to index
    %c0_38 = arith.constant 0 : index
    %c0_39 = arith.constant 0 : index
    %120 = vector.load %arg8[%119, %c0_38, %c0_39] : memref<8x8x384xf32, #tpu.memory_space<vmem>>, vector<1x8x384xf32>
    %121 = vector.shape_cast %120 : vector<1x8x384xf32> to vector<8x384xf32>
    %122 = arith.truncf %114 : vector<8x128xf32> to vector<8x128xbf16>
    %cst_40 = arith.constant dense<0.000000e+00> : vector<8x384xf32>
    %123 = tpu.matmul %122, %12, %cst_40 {dimension_numbers = #tpu.dot_dimension_numbers<[1], [0], [0], [1], [0, 0, 1, 1], [], []>} : vector<8x128xbf16>, vector<128x384xbf16>, vector<8x384xf32> -> vector<8x384xf32>
    %124 = vector.extract_strided_slice %121 {offsets = [0, 0], sizes = [8, 128], strides = [1, 1]} : vector<8x384xf32> to vector<8x128xf32>
    %125 = vector.extract_strided_slice %123 {offsets = [0, 0], sizes = [8, 128], strides = [1, 1]} : vector<8x384xf32> to vector<8x128xf32>
    %126 = arith.addf %124, %125 : vector<8x128xf32>
    %127 = arith.negf %126 : vector<8x128xf32>
    %128 = math.exp %127 : vector<8x128xf32>
    %cst_41 = arith.constant 1.000000e+00 : f32
    %129 = vector.broadcast %cst_41 : f32 to vector<8x128xf32>
    %130 = arith.addf %129, %128 : vector<8x128xf32>
    %131 = arith.divf %129, %130 : vector<8x128xf32>
    %132 = vector.extract_strided_slice %121 {offsets = [0, 128], sizes = [8, 128], strides = [1, 1]} : vector<8x384xf32> to vector<8x128xf32>
    %133 = vector.extract_strided_slice %123 {offsets = [0, 128], sizes = [8, 128], strides = [1, 1]} : vector<8x384xf32> to vector<8x128xf32>
    %134 = arith.addf %132, %133 : vector<8x128xf32>
    %135 = arith.negf %134 : vector<8x128xf32>
    %136 = math.exp %135 : vector<8x128xf32>
    %cst_42 = arith.constant 1.000000e+00 : f32
    %137 = vector.broadcast %cst_42 : f32 to vector<8x128xf32>
    %138 = arith.addf %137, %136 : vector<8x128xf32>
    %139 = arith.divf %137, %138 : vector<8x128xf32>
    %140 = vector.extract_strided_slice %121 {offsets = [0, 256], sizes = [8, 128], strides = [1, 1]} : vector<8x384xf32> to vector<8x128xf32>
    %141 = vector.extract_strided_slice %123 {offsets = [0, 256], sizes = [8, 128], strides = [1, 1]} : vector<8x384xf32> to vector<8x128xf32>
    %142 = arith.addf %141, %15 : vector<8x128xf32>
    %143 = arith.mulf %131, %142 : vector<8x128xf32>
    %144 = arith.addf %140, %143 : vector<8x128xf32>
    %145 = math.tanh %144 : vector<8x128xf32>
    %146 = arith.subf %114, %145 : vector<8x128xf32>
    %147 = arith.mulf %139, %146 : vector<8x128xf32>
    %148 = arith.addf %145, %147 : vector<8x128xf32>
    %149 = arith.index_cast %c3_i32 : i32 to index
    %c0_43 = arith.constant 0 : index
    %c0_44 = arith.constant 0 : index
    %150 = vector.load %arg7[%149, %c0_43, %c0_44] : memref<8x8x128xf32, #tpu.memory_space<vmem>>, vector<1x8x128xf32>
    %151 = vector.shape_cast %150 : vector<1x8x128xf32> to vector<8x128xf32>
    %152 = vector.shape_cast %148 : vector<8x128xf32> to vector<1x8x128xf32>
    tpu.vector_store %arg7[%149, %c0_43, %c0_44], %152 {strides = array<i32>} : memref<8x8x128xf32, #tpu.memory_space<vmem>>, vector<1x8x128xf32>,
    %c4_i32 = arith.constant 4 : i32
    %153 = arith.index_cast %c4_i32 : i32 to index
    %c0_45 = arith.constant 0 : index
    %c0_46 = arith.constant 0 : index
    %154 = vector.load %arg8[%153, %c0_45, %c0_46] : memref<8x8x384xf32, #tpu.memory_space<vmem>>, vector<1x8x384xf32>
    %155 = vector.shape_cast %154 : vector<1x8x384xf32> to vector<8x384xf32>
    %156 = arith.truncf %148 : vector<8x128xf32> to vector<8x128xbf16>
    %cst_47 = arith.constant dense<0.000000e+00> : vector<8x384xf32>
    %157 = tpu.matmul %156, %12, %cst_47 {dimension_numbers = #tpu.dot_dimension_numbers<[1], [0], [0], [1], [0, 0, 1, 1], [], []>} : vector<8x128xbf16>, vector<128x384xbf16>, vector<8x384xf32> -> vector<8x384xf32>
    %158 = vector.extract_strided_slice %155 {offsets = [0, 0], sizes = [8, 128], strides = [1, 1]} : vector<8x384xf32> to vector<8x128xf32>
    %159 = vector.extract_strided_slice %157 {offsets = [0, 0], sizes = [8, 128], strides = [1, 1]} : vector<8x384xf32> to vector<8x128xf32>
    %160 = arith.addf %158, %159 : vector<8x128xf32>
    %161 = arith.negf %160 : vector<8x128xf32>
    %162 = math.exp %161 : vector<8x128xf32>
    %cst_48 = arith.constant 1.000000e+00 : f32
    %163 = vector.broadcast %cst_48 : f32 to vector<8x128xf32>
    %164 = arith.addf %163, %162 : vector<8x128xf32>
    %165 = arith.divf %163, %164 : vector<8x128xf32>
    %166 = vector.extract_strided_slice %155 {offsets = [0, 128], sizes = [8, 128], strides = [1, 1]} : vector<8x384xf32> to vector<8x128xf32>
    %167 = vector.extract_strided_slice %157 {offsets = [0, 128], sizes = [8, 128], strides = [1, 1]} : vector<8x384xf32> to vector<8x128xf32>
    %168 = arith.addf %166, %167 : vector<8x128xf32>
    %169 = arith.negf %168 : vector<8x128xf32>
    %170 = math.exp %169 : vector<8x128xf32>
    %cst_49 = arith.constant 1.000000e+00 : f32
    %171 = vector.broadcast %cst_49 : f32 to vector<8x128xf32>
    %172 = arith.addf %171, %170 : vector<8x128xf32>
    %173 = arith.divf %171, %172 : vector<8x128xf32>
    %174 = vector.extract_strided_slice %155 {offsets = [0, 256], sizes = [8, 128], strides = [1, 1]} : vector<8x384xf32> to vector<8x128xf32>
    %175 = vector.extract_strided_slice %157 {offsets = [0, 256], sizes = [8, 128], strides = [1, 1]} : vector<8x384xf32> to vector<8x128xf32>
    %176 = arith.addf %175, %15 : vector<8x128xf32>
    %177 = arith.mulf %165, %176 : vector<8x128xf32>
    %178 = arith.addf %174, %177 : vector<8x128xf32>
    %179 = math.tanh %178 : vector<8x128xf32>
    %180 = arith.subf %148, %179 : vector<8x128xf32>
    %181 = arith.mulf %173, %180 : vector<8x128xf32>
    %182 = arith.addf %179, %181 : vector<8x128xf32>
    %183 = arith.index_cast %c4_i32 : i32 to index
    %c0_50 = arith.constant 0 : index
    %c0_51 = arith.constant 0 : index
    %184 = vector.load %arg7[%183, %c0_50, %c0_51] : memref<8x8x128xf32, #tpu.memory_space<vmem>>, vector<1x8x128xf32>
    %185 = vector.shape_cast %184 : vector<1x8x128xf32> to vector<8x128xf32>
    %186 = vector.shape_cast %182 : vector<8x128xf32> to vector<1x8x128xf32>
    tpu.vector_store %arg7[%183, %c0_50, %c0_51], %186 {strides = array<i32>} : memref<8x8x128xf32, #tpu.memory_space<vmem>>, vector<1x8x128xf32>,
    %c5_i32 = arith.constant 5 : i32
    %187 = arith.index_cast %c5_i32 : i32 to index
    %c0_52 = arith.constant 0 : index
    %c0_53 = arith.constant 0 : index
    %188 = vector.load %arg8[%187, %c0_52, %c0_53] : memref<8x8x384xf32, #tpu.memory_space<vmem>>, vector<1x8x384xf32>
    %189 = vector.shape_cast %188 : vector<1x8x384xf32> to vector<8x384xf32>
    %190 = arith.truncf %182 : vector<8x128xf32> to vector<8x128xbf16>
    %cst_54 = arith.constant dense<0.000000e+00> : vector<8x384xf32>
    %191 = tpu.matmul %190, %12, %cst_54 {dimension_numbers = #tpu.dot_dimension_numbers<[1], [0], [0], [1], [0, 0, 1, 1], [], []>} : vector<8x128xbf16>, vector<128x384xbf16>, vector<8x384xf32> -> vector<8x384xf32>
    %192 = vector.extract_strided_slice %189 {offsets = [0, 0], sizes = [8, 128], strides = [1, 1]} : vector<8x384xf32> to vector<8x128xf32>
    %193 = vector.extract_strided_slice %191 {offsets = [0, 0], sizes = [8, 128], strides = [1, 1]} : vector<8x384xf32> to vector<8x128xf32>
    %194 = arith.addf %192, %193 : vector<8x128xf32>
    %195 = arith.negf %194 : vector<8x128xf32>
    %196 = math.exp %195 : vector<8x128xf32>
    %cst_55 = arith.constant 1.000000e+00 : f32
    %197 = vector.broadcast %cst_55 : f32 to vector<8x128xf32>
    %198 = arith.addf %197, %196 : vector<8x128xf32>
    %199 = arith.divf %197, %198 : vector<8x128xf32>
    %200 = vector.extract_strided_slice %189 {offsets = [0, 128], sizes = [8, 128], strides = [1, 1]} : vector<8x384xf32> to vector<8x128xf32>
    %201 = vector.extract_strided_slice %191 {offsets = [0, 128], sizes = [8, 128], strides = [1, 1]} : vector<8x384xf32> to vector<8x128xf32>
    %202 = arith.addf %200, %201 : vector<8x128xf32>
    %203 = arith.negf %202 : vector<8x128xf32>
    %204 = math.exp %203 : vector<8x128xf32>
    %cst_56 = arith.constant 1.000000e+00 : f32
    %205 = vector.broadcast %cst_56 : f32 to vector<8x128xf32>
    %206 = arith.addf %205, %204 : vector<8x128xf32>
    %207 = arith.divf %205, %206 : vector<8x128xf32>
    %208 = vector.extract_strided_slice %189 {offsets = [0, 256], sizes = [8, 128], strides = [1, 1]} : vector<8x384xf32> to vector<8x128xf32>
    %209 = vector.extract_strided_slice %191 {offsets = [0, 256], sizes = [8, 128], strides = [1, 1]} : vector<8x384xf32> to vector<8x128xf32>
    %210 = arith.addf %209, %15 : vector<8x128xf32>
    %211 = arith.mulf %199, %210 : vector<8x128xf32>
    %212 = arith.addf %208, %211 : vector<8x128xf32>
    %213 = math.tanh %212 : vector<8x128xf32>
    %214 = arith.subf %182, %213 : vector<8x128xf32>
    %215 = arith.mulf %207, %214 : vector<8x128xf32>
    %216 = arith.addf %213, %215 : vector<8x128xf32>
    %217 = arith.index_cast %c5_i32 : i32 to index
    %c0_57 = arith.constant 0 : index
    %c0_58 = arith.constant 0 : index
    %218 = vector.load %arg7[%217, %c0_57, %c0_58] : memref<8x8x128xf32, #tpu.memory_space<vmem>>, vector<1x8x128xf32>
    %219 = vector.shape_cast %218 : vector<1x8x128xf32> to vector<8x128xf32>
    %220 = vector.shape_cast %216 : vector<8x128xf32> to vector<1x8x128xf32>
    tpu.vector_store %arg7[%217, %c0_57, %c0_58], %220 {strides = array<i32>} : memref<8x8x128xf32, #tpu.memory_space<vmem>>, vector<1x8x128xf32>,
    %c6_i32 = arith.constant 6 : i32
    %221 = arith.index_cast %c6_i32 : i32 to index
    %c0_59 = arith.constant 0 : index
    %c0_60 = arith.constant 0 : index
    %222 = vector.load %arg8[%221, %c0_59, %c0_60] : memref<8x8x384xf32, #tpu.memory_space<vmem>>, vector<1x8x384xf32>
    %223 = vector.shape_cast %222 : vector<1x8x384xf32> to vector<8x384xf32>
    %224 = arith.truncf %216 : vector<8x128xf32> to vector<8x128xbf16>
    %cst_61 = arith.constant dense<0.000000e+00> : vector<8x384xf32>
    %225 = tpu.matmul %224, %12, %cst_61 {dimension_numbers = #tpu.dot_dimension_numbers<[1], [0], [0], [1], [0, 0, 1, 1], [], []>} : vector<8x128xbf16>, vector<128x384xbf16>, vector<8x384xf32> -> vector<8x384xf32>
    %226 = vector.extract_strided_slice %223 {offsets = [0, 0], sizes = [8, 128], strides = [1, 1]} : vector<8x384xf32> to vector<8x128xf32>
    %227 = vector.extract_strided_slice %225 {offsets = [0, 0], sizes = [8, 128], strides = [1, 1]} : vector<8x384xf32> to vector<8x128xf32>
    %228 = arith.addf %226, %227 : vector<8x128xf32>
    %229 = arith.negf %228 : vector<8x128xf32>
    %230 = math.exp %229 : vector<8x128xf32>
    %cst_62 = arith.constant 1.000000e+00 : f32
    %231 = vector.broadcast %cst_62 : f32 to vector<8x128xf32>
    %232 = arith.addf %231, %230 : vector<8x128xf32>
    %233 = arith.divf %231, %232 : vector<8x128xf32>
    %234 = vector.extract_strided_slice %223 {offsets = [0, 128], sizes = [8, 128], strides = [1, 1]} : vector<8x384xf32> to vector<8x128xf32>
    %235 = vector.extract_strided_slice %225 {offsets = [0, 128], sizes = [8, 128], strides = [1, 1]} : vector<8x384xf32> to vector<8x128xf32>
    %236 = arith.addf %234, %235 : vector<8x128xf32>
    %237 = arith.negf %236 : vector<8x128xf32>
    %238 = math.exp %237 : vector<8x128xf32>
    %cst_63 = arith.constant 1.000000e+00 : f32
    %239 = vector.broadcast %cst_63 : f32 to vector<8x128xf32>
    %240 = arith.addf %239, %238 : vector<8x128xf32>
    %241 = arith.divf %239, %240 : vector<8x128xf32>
    %242 = vector.extract_strided_slice %223 {offsets = [0, 256], sizes = [8, 128], strides = [1, 1]} : vector<8x384xf32> to vector<8x128xf32>
    %243 = vector.extract_strided_slice %225 {offsets = [0, 256], sizes = [8, 128], strides = [1, 1]} : vector<8x384xf32> to vector<8x128xf32>
    %244 = arith.addf %243, %15 : vector<8x128xf32>
    %245 = arith.mulf %233, %244 : vector<8x128xf32>
    %246 = arith.addf %242, %245 : vector<8x128xf32>
    %247 = math.tanh %246 : vector<8x128xf32>
    %248 = arith.subf %216, %247 : vector<8x128xf32>
    %249 = arith.mulf %241, %248 : vector<8x128xf32>
    %250 = arith.addf %247, %249 : vector<8x128xf32>
    %251 = arith.index_cast %c6_i32 : i32 to index
    %c0_64 = arith.constant 0 : index
    %c0_65 = arith.constant 0 : index
    %252 = vector.load %arg7[%251, %c0_64, %c0_65] : memref<8x8x128xf32, #tpu.memory_space<vmem>>, vector<1x8x128xf32>
    %253 = vector.shape_cast %252 : vector<1x8x128xf32> to vector<8x128xf32>
    %254 = vector.shape_cast %250 : vector<8x128xf32> to vector<1x8x128xf32>
    tpu.vector_store %arg7[%251, %c0_64, %c0_65], %254 {strides = array<i32>} : memref<8x8x128xf32, #tpu.memory_space<vmem>>, vector<1x8x128xf32>,
    %c7_i32 = arith.constant 7 : i32
    %255 = arith.index_cast %c7_i32 : i32 to index
    %c0_66 = arith.constant 0 : index
    %c0_67 = arith.constant 0 : index
    %256 = vector.load %arg8[%255, %c0_66, %c0_67] : memref<8x8x384xf32, #tpu.memory_space<vmem>>, vector<1x8x384xf32>
    %257 = vector.shape_cast %256 : vector<1x8x384xf32> to vector<8x384xf32>
    %258 = arith.truncf %250 : vector<8x128xf32> to vector<8x128xbf16>
    %cst_68 = arith.constant dense<0.000000e+00> : vector<8x384xf32>
    %259 = tpu.matmul %258, %12, %cst_68 {dimension_numbers = #tpu.dot_dimension_numbers<[1], [0], [0], [1], [0, 0, 1, 1], [], []>} : vector<8x128xbf16>, vector<128x384xbf16>, vector<8x384xf32> -> vector<8x384xf32>
    %260 = vector.extract_strided_slice %257 {offsets = [0, 0], sizes = [8, 128], strides = [1, 1]} : vector<8x384xf32> to vector<8x128xf32>
    %261 = vector.extract_strided_slice %259 {offsets = [0, 0], sizes = [8, 128], strides = [1, 1]} : vector<8x384xf32> to vector<8x128xf32>
    %262 = arith.addf %260, %261 : vector<8x128xf32>
    %263 = arith.negf %262 : vector<8x128xf32>
    %264 = math.exp %263 : vector<8x128xf32>
    %cst_69 = arith.constant 1.000000e+00 : f32
    %265 = vector.broadcast %cst_69 : f32 to vector<8x128xf32>
    %266 = arith.addf %265, %264 : vector<8x128xf32>
    %267 = arith.divf %265, %266 : vector<8x128xf32>
    %268 = vector.extract_strided_slice %257 {offsets = [0, 128], sizes = [8, 128], strides = [1, 1]} : vector<8x384xf32> to vector<8x128xf32>
    %269 = vector.extract_strided_slice %259 {offsets = [0, 128], sizes = [8, 128], strides = [1, 1]} : vector<8x384xf32> to vector<8x128xf32>
    %270 = arith.addf %268, %269 : vector<8x128xf32>
    %271 = arith.negf %270 : vector<8x128xf32>
    %272 = math.exp %271 : vector<8x128xf32>
    %cst_70 = arith.constant 1.000000e+00 : f32
    %273 = vector.broadcast %cst_70 : f32 to vector<8x128xf32>
    %274 = arith.addf %273, %272 : vector<8x128xf32>
    %275 = arith.divf %273, %274 : vector<8x128xf32>
    %276 = vector.extract_strided_slice %257 {offsets = [0, 256], sizes = [8, 128], strides = [1, 1]} : vector<8x384xf32> to vector<8x128xf32>
    %277 = vector.extract_strided_slice %259 {offsets = [0, 256], sizes = [8, 128], strides = [1, 1]} : vector<8x384xf32> to vector<8x128xf32>
    %278 = arith.addf %277, %15 : vector<8x128xf32>
    %279 = arith.mulf %267, %278 : vector<8x128xf32>
    %280 = arith.addf %276, %279 : vector<8x128xf32>
    %281 = math.tanh %280 : vector<8x128xf32>
    %282 = arith.subf %250, %281 : vector<8x128xf32>
    %283 = arith.mulf %275, %282 : vector<8x128xf32>
    %284 = arith.addf %281, %283 : vector<8x128xf32>
    %285 = arith.index_cast %c7_i32 : i32 to index
    %c0_71 = arith.constant 0 : index
    %c0_72 = arith.constant 0 : index
    %286 = vector.load %arg7[%285, %c0_71, %c0_72] : memref<8x8x128xf32, #tpu.memory_space<vmem>>, vector<1x8x128xf32>
    %287 = vector.shape_cast %286 : vector<1x8x128xf32> to vector<8x128xf32>
    %288 = vector.shape_cast %284 : vector<8x128xf32> to vector<1x8x128xf32>
    tpu.vector_store %arg7[%285, %c0_71, %c0_72], %288 {strides = array<i32>} : memref<8x8x128xf32, #tpu.memory_space<vmem>>, vector<1x8x128xf32>,
    %c8_i32 = arith.constant 8 : i32
    %c0_73 = arith.constant 0 : index
    %c0_74 = arith.constant 0 : index
    %289 = vector.load %arg9[%c0_73, %c0_74] : memref<8x128xf32, #tpu.memory_space<vmem>>, vector<8x128xf32>
    tpu.vector_store %arg9[%c0_73, %c0_74], %284 {strides = array<i32>} : memref<8x128xf32, #tpu.memory_space<vmem>>, vector<8x128xf32>,
    return
  }
  func.func @transform_0(%arg0: i32, %arg1: i32) -> (i32, i32, i32) {
    %c0_i32 = arith.constant 0 : i32
    %c0_i32_0 = arith.constant 0 : i32
    return %arg1, %arg0, %c0_i32 : i32, i32, i32
  }
  func.func @transform_1(%arg0: i32, %arg1: i32) -> (i32, i32) {
    %c0_i32 = arith.constant 0 : i32
    %c0_i32_0 = arith.constant 0 : i32
    %c0_i32_1 = arith.constant 0 : i32
    return %c0_i32, %c0_i32_0 : i32, i32
  }
  func.func @transform_2(%arg0: i32, %arg1: i32) -> (i32, i32) {
    %c0_i32 = arith.constant 0 : i32
    %c0_i32_0 = arith.constant 0 : i32
    %c0_i32_1 = arith.constant 0 : i32
    return %c0_i32, %c0_i32_0 : i32, i32
  }
  func.func @transform_3(%arg0: i32, %arg1: i32) -> (i32, i32) {
    %c0_i32 = arith.constant 0 : i32
    %c0_i32_0 = arith.constant 0 : i32
    %c0_i32_1 = arith.constant 0 : i32
    return %c0_i32, %c0_i32_0 : i32, i32
  }
  func.func @transform_4(%arg0: i32, %arg1: i32) -> (i32, i32) {
    %c0_i32 = arith.constant 0 : i32
    %c0_i32_0 = arith.constant 0 : i32
    %c0_i32_1 = arith.constant 0 : i32
    return %c0_i32, %c0_i32_0 : i32, i32
  }
  func.func @transform_5(%arg0: i32, %arg1: i32) -> (i32, i32, i32) {
    %c0_i32 = arith.constant 0 : i32
    %c0_i32_0 = arith.constant 0 : i32
    return %arg1, %arg0, %c0_i32 : i32, i32, i32
  }
}

</mosaic_0001>

<llo_original>
// kernel: tpu_custom_call.1
$region0: #{tpu_custom_call.1}
  #allocation0 [shape = 'u32[]', space=smem, size = 0x4, offset = 0x4, fixed_abs, tag = 'smem constant byte address 0x4 - core index']
  #allocation1 [shape = 'u32[72,128]{1,0:T(1,128)}', space=vmem, size = 0x9000, scoped, tag = 'internal scratch']
  #allocation2 [shape = 'f32[8,8,384]{2,1,0:T(8,128)}', space=vmem, size = 0x18000, scoped, tag = 'scratch operand']
  #allocation3 [shape = 'f32[8,128]{1,0:T(8,128)}', space=vmem, size = 0x1000, scoped, tag = 'scratch operand']
  %s0 = inlined_call_operand.hbm [shape: bf16[8,8,32], index: 0, kind: input, shape index: {}]
  %s1 = inlined_call_operand.hbm [shape: bf16[32,384], index: 1, kind: input, shape index: {}]
  %s2 = inlined_call_operand.hbm [shape: bf16[128,384], index: 2, kind: input, shape index: {}]
  %s3 = inlined_call_operand.hbm [shape: f32[1,384], index: 3, kind: input, shape index: {}]
  %s4 = inlined_call_operand.vmem [shape: f32[1,128], index: 4, kind: input, shape index: {}]
  %s5 = inlined_call_operand.hbm [shape: f32[8,8,128], index: 5, kind: output, shape index: {}]
  %s6 = sld [smem:[#allocation0]]
  $region50: #{tpu_custom_call.1} parent=0
    _
  %s8 = ssub.s32 1, %s6
  %s9 = scalar_select 0, %s8, %s6
  $region1: #{tpu_custom_call.1} parent=0
    #allocation4 [shape = 'u8[16384]{0}', space=vmem, size = 0x4000, scoped, tag = 'input window, operand 0, single buffered']
    #allocation5 [shape = 's32[1]{0}', space=sflag, size = 0x4, scoped, tag = 'scoped memory for tpu_custom_call.1']
    #allocation6 [shape = 's32[1]{0}', space=sflag, size = 0x4, scoped, tag = 'scoped memory for tpu_custom_call.1']
    #allocation7 [shape = 'u8[24576]{0}', space=vmem, size = 0x6000, scoped, tag = 'input window, operand 1, single buffered']
    #allocation8 [shape = 's32[1]{0}', space=sflag, size = 0x4, scoped, tag = 'scoped memory for tpu_custom_call.1']
    #allocation9 [shape = 'u8[98304]{0}', space=vmem, size = 0x18000, scoped, tag = 'input window, operand 2, single buffered']
    #allocation10 [shape = 'u8[1536]{0}', space=vmem, size = 0x800, scoped, tag = 'input window, operand 3, single buffered']
    #allocation11 [shape = 's32[1]{0}', space=sflag, size = 0x4, scoped, tag = 'scoped memory for tpu_custom_call.1']
    #allocation12 [shape = 'u8[32768]{0}', space=vmem, size = 0x8000, scoped, tag = 'output window, operand 0, single buffered']
    %10 = vsyncpa [#allocation5], 0
    %11 = vsyncpa [#allocation8], 0
    %12 = vsyncpa [#allocation11], 0
    %13 = vsyncpa [#allocation6], 0
    // Predicated region
    $region2: #{tpu_custom_call.1} parent=1 // pred_check
      _
    $region3: #{tpu_custom_call.1} parent=1 // pred_check_branch
      %15 = sbr.rel (0) target = $region5
    $region4: #{tpu_custom_call.1} parent=1 // pred_region
      %17 = vsyncadd [#allocation5], 0
      %s18 = sshll.u32 %s0, 4
      %s19 = int_to_ptr.hbm [resolvable:$true] %s18
      %s20 = sshll.u32 [#allocation4], 4
      %s21 = int_to_ptr.vmem [resolvable:$true] %s20
      %26 = dma.hbm_to_vmem [thread:$0]  %s19, 512, %s21, [#allocation5], 64, 64, 4
    $region5: #{tpu_custom_call.1} parent=1 // pred_fallthru
      _
    // Predicated region
    $region6: #{tpu_custom_call.1} parent=1 // pred_check
      _
    $region7: #{tpu_custom_call.1} parent=1 // pred_check_branch
      %28 = sbr.rel (0) target = $region9
    $region8: #{tpu_custom_call.1} parent=1 // pred_region
      %30 = vsyncadd [#allocation8], 0
      %s31 = sshll.u32 %s1, 4
      %s32 = int_to_ptr.hbm [resolvable:$true] %s31
      %s33 = sshll.u32 [#allocation7], 4
      %s34 = int_to_ptr.vmem [resolvable:$true] %s33
      %39 = dma.hbm_to_vmem [thread:$0]  %s32, 768, %s34, [#allocation8], 192, 192, 12
    $region9: #{tpu_custom_call.1} parent=1 // pred_fallthru
      _
    // Predicated region
    $region10: #{tpu_custom_call.1} parent=1 // pred_check
      _
    $region11: #{tpu_custom_call.1} parent=1 // pred_check_branch
      %41 = sbr.rel (0) target = $region13
    $region12: #{tpu_custom_call.1} parent=1 // pred_region
      %43 = vsyncadd [#allocation8], 0
      %s44 = sshll.u32 %s2, 4
      %s45 = int_to_ptr.hbm [resolvable:$true] %s44
      %s46 = sshll.u32 [#allocation9], 4
      %s47 = int_to_ptr.vmem [resolvable:$true] %s46
      %52 = dma.hbm_to_vmem [thread:$0]  %s45, 3072, %s47, [#allocation8], 192, 192, 12
    $region13: #{tpu_custom_call.1} parent=1 // pred_fallthru
      _
    // Predicated region
    $region14: #{tpu_custom_call.1} parent=1 // pred_check
      _
    $region15: #{tpu_custom_call.1} parent=1 // pred_check_branch
      %54 = sbr.rel (0) target = $region17
    $region16: #{tpu_custom_call.1} parent=1 // pred_region
      %56 = vsyncadd [#allocation11], 0
      %s58 = sshll.u32 %s3, 4
      %s59 = int_to_ptr.hbm [resolvable:$true] %s58
      %s60 = sshll.u32 [#allocation10], 4
      %s61 = int_to_ptr.vmem [resolvable:$true] %s60
      %63 = dma.hbm_to_vmem [thread:$0]  %s59, 48, %s61, [#allocation11]
    $region17: #{tpu_custom_call.1} parent=1 // pred_fallthru
      _
    // Predicated region
    $region18: #{tpu_custom_call.1} parent=1 // pred_check
      _
    $region19: #{tpu_custom_call.1} parent=1 // pred_check_branch
      %65 = sbr.rel (0) target = $region21
    $region20: #{tpu_custom_call.1} parent=1 // pred_region
      _
    $region21: #{tpu_custom_call.1} parent=1 // pred_fallthru
      _
    // Predicated region
    $region22: #{tpu_custom_call.1} parent=1 // pred_check
      _
    $region23: #{tpu_custom_call.1} parent=1 // pred_check_branch
      %67 = sbr.rel (0) target = $region25
    $region24: #{tpu_custom_call.1} parent=1 // pred_region
      %69 = dma.done [#allocation5], 512
    $region25: #{tpu_custom_call.1} parent=1 // pred_fallthru
      _
    // Predicated region
    $region26: #{tpu_custom_call.1} parent=1 // pred_check
      _
    $region27: #{tpu_custom_call.1} parent=1 // pred_check_branch
      %71 = sbr.rel (0) target = $region29
    $region28: #{tpu_custom_call.1} parent=1 // pred_region
      %73 = dma.done [#allocation8], 768
    $region29: #{tpu_custom_call.1} parent=1 // pred_fallthru
      _
    // Predicated region
    $region30: #{tpu_custom_call.1} parent=1 // pred_check
      _
    $region31: #{tpu_custom_call.1} parent=1 // pred_check_branch
      %75 = sbr.rel (0) target = $region33
    $region32: #{tpu_custom_call.1} parent=1 // pred_region
      %77 = dma.done [#allocation8], 3072
    $region33: #{tpu_custom_call.1} parent=1 // pred_fallthru
      _
    // Predicated region
    $region34: #{tpu_custom_call.1} parent=1 // pred_check
      _
    $region35: #{tpu_custom_call.1} parent=1 // pred_check_branch
      %79 = sbr.rel (0) target = $region37
    $region36: #{tpu_custom_call.1} parent=1 // pred_region
      %81 = dma.done [#allocation11], 48
    $region37: #{tpu_custom_call.1} parent=1 // pred_fallthru
      _
    %p83 = scmp.eq.s32.totalorder 0, 0
    // Predicated region
    $region38: #{tpu_custom_call.1} parent=1 // pred_check
      %p84 = pneg %p83
    $region39: #{tpu_custom_call.1} parent=1 // pred_check_branch
      %86 = sbr.rel (%p84) target = $region41
    $region40: #{tpu_custom_call.1} parent=1 // pred_region
      %87 = vst [vmem:[#allocation3] sm:$0xff] 0.0
    $region41: #{tpu_custom_call.1} parent=1 // pred_fallthru
      _
    %v88 = vld [vmem:[#allocation4] sm:$0xf]
    %v89 = vld [vmem:[#allocation4 + $0x4] sm:$0xf]
    %v90 = vld [vmem:[#allocation4 + $0x8] sm:$0xf]
    %v91 = vld [vmem:[#allocation4 + $0xc] sm:$0xf]
    %v92 = vld [vmem:[#allocation4 + $0x10] sm:$0xf]
    %v93 = vld [vmem:[#allocation4 + $0x14] sm:$0xf]
    %v94 = vld [vmem:[#allocation4 + $0x18] sm:$0xf]
    %v95 = vld [vmem:[#allocation4 + $0x1c] sm:$0xf]
    %v96 = vld [vmem:[#allocation7] sm:$0xff]
    %v97 = vld [vmem:[#allocation7 + $0x8] sm:$0xf]
    %v98 = vld [vmem:[#allocation7 + $0xc] sm:$0xff]
    %v99 = vld [vmem:[#allocation7 + $0x14] sm:$0xf]
    %v100 = vld [vmem:[#allocation7 + $0x18] sm:$0xff]
    %v101 = vld [vmem:[#allocation7 + $0x20] sm:$0xf]
    %v102 = vld [vmem:[#allocation7 + $0x24] sm:$0xff]
    %v103 = vld [vmem:[#allocation7 + $0x2c] sm:$0xf]
    %v104 = vld [vmem:[#allocation10] sm:$0x7]
    %v106 = vperm.slane %v104, 0
    %v107 = vperm.slane %v104, 1
    %v108 = vperm.slane %v104, 2
    %v120 = vunpack.c.l.b16 %v88
    %v121 = vunpack.c.l.b16 %v89
    %v122 = vunpack.c.l.b16 %v90
    %v123 = vunpack.c.l.b16 %v91
    %v124 = vunpack.c.l.b16 %v92
    %v125 = vunpack.c.l.b16 %v93
    %v126 = vunpack.c.l.b16 %v94
    %v127 = vunpack.c.l.b16 %v95
    %v128 = vpack.c.b16 %v121, %v120
    %v129 = vpack.c.b16 %v123, %v122
    %v130 = vpack.c.b16 %v125, %v124
    %v131 = vpack.c.b16 %v127, %v126
    %v140 = vunpack.c.l.b16 %v96
    %v141 = vunpack.c.h.b16 %v96
    %v142 = vunpack.c.l.b16 %v97
    %v143 = vunpack.c.l.b16 %v98
    %v144 = vunpack.c.h.b16 %v98
    %v145 = vunpack.c.l.b16 %v99
    %v146 = vunpack.c.l.b16 %v100
    %v147 = vunpack.c.h.b16 %v100
    %v148 = vunpack.c.l.b16 %v101
    %v149 = vunpack.c.l.b16 %v102
    %v150 = vunpack.c.h.b16 %v102
    %v151 = vunpack.c.l.b16 %v103
    %v152 = vpack.c.b16 %v143, %v140
    %v153 = vpack.c.b16 %v144, %v141
    %v154 = vpack.c.b16 %v145, %v142
    %v155 = vpack.c.b16 %v149, %v146
    %v156 = vpack.c.b16 %v150, %v147
    %v157 = vpack.c.b16 %v151, %v148
    %vm164 = vcmask 261120
    %v166 = vsel %vm164, %v128, 0
    %v169 = vsel %vm164, %v129, 0
    %v172 = vsel %vm164, %v130, 0
    %v175 = vsel %vm164, %v131, 0
    %177 = vmatpush.bf16.msra.mxu0 0
    %178 = vmatpush.bf16.msra.mxu0 0
    %179 = vmatpush.bf16.msra.mxu0 0
    %180 = vmatpush.bf16.msra.mxu0 0
    %181 = vmatpush.bf16.msra.mxu0 0
    %182 = vmatpush.bf16.msra.mxu0 0
    %183 = vmatpush.bf16.msra.mxu0 %v155
    %184 = vmatpush.bf16.msra.mxu0 %v152
    %185 = vmatmul.bf16.gmra.mxu0 %v166
    %v186 = vpop.f32.mrf.mxu0
    %v187 = vadd.f32 %v106, %v186
    %v188 = vpop.f32.mrf.mxu0
    %v189 = vadd.f32 %v106, %v188
    %190 = vmatmul.bf16.gmra.mxu0 %v169
    %v191 = vpop.f32.mrf.mxu0
    %v192 = vadd.f32 %v106, %v191
    %v193 = vpop.f32.mrf.mxu0
    %v194 = vadd.f32 %v106, %v193
    %195 = vmatmul.bf16.gmra.mxu0 %v172
    %v196 = vpop.f32.mrf.mxu0
    %v197 = vadd.f32 %v106, %v196
    %v198 = vpop.f32.mrf.mxu0
    %v199 = vadd.f32 %v106, %v198
    %200 = vmatmul.bf16.gmra.mxu0 %v175
    %v201 = vpop.f32.mrf.mxu0
    %v202 = vadd.f32 %v106, %v201
    %v203 = vpop.f32.mrf.mxu0
    %v204 = vadd.f32 %v106, %v203
    %205 = vdwg.mxu0
    %206 = vmatpush.bf16.msra.mxu0 0
    %207 = vmatpush.bf16.msra.mxu0 0
    %208 = vmatpush.bf16.msra.mxu0 0
    %209 = vmatpush.bf16.msra.mxu0 0
    %210 = vmatpush.bf16.msra.mxu0 0
    %211 = vmatpush.bf16.msra.mxu0 0
    %212 = vmatpush.bf16.msra.mxu0 %v156
    %213 = vmatpush.bf16.msra.mxu0 %v153
    %214 = vmatmul.bf16.gmra.mxu0 %v166
    %v215 = vpop.f32.mrf.mxu0
    %v216 = vadd.f32 %v107, %v215
    %v217 = vpop.f32.mrf.mxu0
    %v218 = vadd.f32 %v107, %v217
    %219 = vmatmul.bf16.gmra.mxu0 %v169
    %v220 = vpop.f32.mrf.mxu0
    %v221 = vadd.f32 %v107, %v220
    %v222 = vpop.f32.mrf.mxu0
    %v223 = vadd.f32 %v107, %v222
    %224 = vmatmul.bf16.gmra.mxu0 %v172
    %v225 = vpop.f32.mrf.mxu0
    %v226 = vadd.f32 %v107, %v225
    %v227 = vpop.f32.mrf.mxu0
    %v228 = vadd.f32 %v107, %v227
    %229 = vmatmul.bf16.gmra.mxu0 %v175
    %v230 = vpop.f32.mrf.mxu0
    %v231 = vadd.f32 %v107, %v230
    %v232 = vpop.f32.mrf.mxu0
    %v233 = vadd.f32 %v107, %v232
    %234 = vdwg.mxu0
    %235 = vmatpush.bf16.msra.mxu0 0
    %236 = vmatpush.bf16.msra.mxu0 0
    %237 = vmatpush.bf16.msra.mxu0 0
    %238 = vmatpush.bf16.msra.mxu0 0
    %239 = vmatpush.bf16.msra.mxu0 0
    %240 = vmatpush.bf16.msra.mxu0 0
    %241 = vmatpush.bf16.msra.mxu0 %v157
    %242 = vmatpush.bf16.msra.mxu0 %v154
    %243 = vmatmul.bf16.gmra.mxu0 %v166
    %v244 = vpop.f32.mrf.mxu0
    %v245 = vadd.f32 %v108, %v244
    %v246 = vpop.f32.mrf.mxu0
    %v247 = vadd.f32 %v108, %v246
    %248 = vmatmul.bf16.gmra.mxu0 %v169
    %v249 = vpop.f32.mrf.mxu0
    %v250 = vadd.f32 %v108, %v249
    %v251 = vpop.f32.mrf.mxu0
    %v252 = vadd.f32 %v108, %v251
    %253 = vmatmul.bf16.gmra.mxu0 %v172
    %v254 = vpop.f32.mrf.mxu0
    %v255 = vadd.f32 %v108, %v254
    %v256 = vpop.f32.mrf.mxu0
    %v257 = vadd.f32 %v108, %v256
    %258 = vmatmul.bf16.gmra.mxu0 %v175
    %v259 = vpop.f32.mrf.mxu0
    %v260 = vadd.f32 %v108, %v259
    %v261 = vpop.f32.mrf.mxu0
    %v262 = vadd.f32 %v108, %v261
    %263 = vdwg.mxu0
    %264 = vst [vmem:[#allocation2] sm:$0xff] %v187
    %265 = vst [vmem:[#allocation2 + $0x8] sm:$0xff] %v216
    %266 = vst [vmem:[#allocation2 + $0x10] sm:$0xff] %v245
    %267 = vst [vmem:[#allocation2 + $0x18] sm:$0xff] %v189
    %268 = vst [vmem:[#allocation2 + $0x20] sm:$0xff] %v218
    %269 = vst [vmem:[#allocation2 + $0x28] sm:$0xff] %v247
    %270 = vst [vmem:[#allocation2 + $0x30] sm:$0xff] %v192
    %271 = vst [vmem:[#allocation2 + $0x38] sm:$0xff] %v221
    %272 = vst [vmem:[#allocation2 + $0x40] sm:$0xff] %v250
    %273 = vst [vmem:[#allocation2 + $0x48] sm:$0xff] %v194
    %274 = vst [vmem:[#allocation2 + $0x50] sm:$0xff] %v223
    %275 = vst [vmem:[#allocation2 + $0x58] sm:$0xff] %v252
    %276 = vst [vmem:[#allocation2 + $0x60] sm:$0xff] %v197
    %277 = vst [vmem:[#allocation2 + $0x68] sm:$0xff] %v226
    %278 = vst [vmem:[#allocation2 + $0x70] sm:$0xff] %v255
    %279 = vst [vmem:[#allocation2 + $0x78] sm:$0xff] %v199
    %280 = vst [vmem:[#allocation2 + $0x80] sm:$0xff] %v228
    %281 = vst [vmem:[#allocation2 + $0x88] sm:$0xff] %v257
    %282 = vst [vmem:[#allocation2 + $0x90] sm:$0xff] %v202
    %283 = vst [vmem:[#allocation2 + $0x98] sm:$0xff] %v231
    %284 = vst [vmem:[#allocation2 + $0xa0] sm:$0xff] %v260
    %285 = vst [vmem:[#allocation2 + $0xa8] sm:$0xff] %v204
    %286 = vst [vmem:[#allocation2 + $0xb0] sm:$0xff] %v233
    %287 = vst [vmem:[#allocation2 + $0xb8] sm:$0xff] %v262
    %v288 = vld [vmem:[#allocation9] sm:$0xff]
    %v289 = vld [vmem:[#allocation9 + $0x8] sm:$0xf]
    %v290 = vld [vmem:[#allocation9 + $0xc] sm:$0xff]
    %v291 = vld [vmem:[#allocation9 + $0x14] sm:$0xf]
    %v292 = vld [vmem:[#allocation9 + $0x18] sm:$0xff]
    %v293 = vld [vmem:[#allocation9 + $0x20] sm:$0xf]
    %v294 = vld [vmem:[#allocation9 + $0x24] sm:$0xff]
    %v295 = vld [vmem:[#allocation9 + $0x2c] sm:$0xf]
    %v296 = vld [vmem:[#allocation9 + $0x30] sm:$0xff]
    %v297 = vld [vmem:[#allocation9 + $0x38] sm:$0xf]
    %v298 = vld [vmem:[#allocation9 + $0x3c] sm:$0xff]
    %v299 = vld [vmem:[#allocation9 + $0x44] sm:$0xf]
    %v300 = vld [vmem:[#allocation9 + $0x48] sm:$0xff]
    %v301 = vld [vmem:[#allocation9 + $0x50] sm:$0xf]
    %v302 = vld [vmem:[#allocation9 + $0x54] sm:$0xff]
    %v303 = vld [vmem:[#allocation9 + $0x5c] sm:$0xf]
    %v304 = vld [vmem:[#allocation9 + $0x60] sm:$0xff]
    %v305 = vld [vmem:[#allocation9 + $0x68] sm:$0xf]
    %v306 = vld [vmem:[#allocation9 + $0x6c] sm:$0xff]
    %v307 = vld [vmem:[#allocation9 + $0x74] sm:$0xf]
    %v308 = vld [vmem:[#allocation9 + $0x78] sm:$0xff]
    %v309 = vld [vmem:[#allocation9 + $0x80] sm:$0xf]
    %v310 = vld [vmem:[#allocation9 + $0x84] sm:$0xff]
    %v311 = vld [vmem:[#allocation9 + $0x8c] sm:$0xf]
    %v312 = vld [vmem:[#allocation9 + $0x90] sm:$0xff]
    %v313 = vld [vmem:[#allocation9 + $0x98] sm:$0xf]
    %v314 = vld [vmem:[#allocation9 + $0x9c] sm:$0xff]
    %v315 = vld [vmem:[#allocation9 + $0xa4] sm:$0xf]
    %v316 = vld [vmem:[#allocation9 + $0xa8] sm:$0xff]
    %v317 = vld [vmem:[#allocation9 + $0xb0] sm:$0xf]
    %v318 = vld [vmem:[#allocation9 + $0xb4] sm:$0xff]
    %v319 = vld [vmem:[#allocation9 + $0xbc] sm:$0xf]
    %v320 = vld [vmem:[%s4] sm:$0x1]
    %v322 = vperm.slane %v320, 0
    %v324 = vld [vmem:[#allocation3] sm:$0xff]
    %v325 = vld [vmem:[#allocation2] sm:$0xff]
    %v326 = vld [vmem:[#allocation2 + $0x8] sm:$0xff]
    %v327 = vld [vmem:[#allocation2 + $0x10] sm:$0xff]
    %v328 = vpack.c.bf16 %v324, %v324
    %v361 = vunpack.c.l.b16 %v288
    %v362 = vunpack.c.h.b16 %v288
    %v363 = vunpack.c.l.b16 %v289
    %v364 = vunpack.c.l.b16 %v290
    %v365 = vunpack.c.h.b16 %v290
    %v366 = vunpack.c.l.b16 %v291
    %v367 = vunpack.c.l.b16 %v292
    %v368 = vunpack.c.h.b16 %v292
    %v369 = vunpack.c.l.b16 %v293
    %v370 = vunpack.c.l.b16 %v294
    %v371 = vunpack.c.h.b16 %v294
    %v372 = vunpack.c.l.b16 %v295
    %v373 = vunpack.c.l.b16 %v296
    %v374 = vunpack.c.h.b16 %v296
    %v375 = vunpack.c.l.b16 %v297
    %v376 = vunpack.c.l.b16 %v298
    %v377 = vunpack.c.h.b16 %v298
    %v378 = vunpack.c.l.b16 %v299
    %v379 = vunpack.c.l.b16 %v300
    %v380 = vunpack.c.h.b16 %v300
    %v381 = vunpack.c.l.b16 %v301
    %v382 = vunpack.c.l.b16 %v302
    %v383 = vunpack.c.h.b16 %v302
    %v384 = vunpack.c.l.b16 %v303
    %v385 = vunpack.c.l.b16 %v304
    %v386 = vunpack.c.h.b16 %v304
    %v387 = vunpack.c.l.b16 %v305
    %v388 = vunpack.c.l.b16 %v306
    %v389 = vunpack.c.h.b16 %v306
    %v390 = vunpack.c.l.b16 %v307
    %v391 = vunpack.c.l.b16 %v308
    %v392 = vunpack.c.h.b16 %v308
    %v393 = vunpack.c.l.b16 %v309
    %v394 = vunpack.c.l.b16 %v310
    %v395 = vunpack.c.h.b16 %v310
    %v396 = vunpack.c.l.b16 %v311
    %v397 = vunpack.c.l.b16 %v312
    %v398 = vunpack.c.h.b16 %v312
    %v399 = vunpack.c.l.b16 %v313
    %v400 = vunpack.c.l.b16 %v314
    %v401 = vunpack.c.h.b16 %v314
    %v402 = vunpack.c.l.b16 %v315
    %v403 = vunpack.c.l.b16 %v316
    %v404 = vunpack.c.h.b16 %v316
    %v405 = vunpack.c.l.b16 %v317
    %v406 = vunpack.c.l.b16 %v318
    %v407 = vunpack.c.h.b16 %v318
    %v408 = vunpack.c.l.b16 %v319
    %v409 = vpack.c.b16 %v364, %v361
    %v410 = vpack.c.b16 %v365, %v362
    %v411 = vpack.c.b16 %v366, %v363
    %v412 = vpack.c.b16 %v370, %v367
    %v413 = vpack.c.b16 %v371, %v368
    %v414 = vpack.c.b16 %v372, %v369
    %v415 = vpack.c.b16 %v376, %v373
    %v416 = vpack.c.b16 %v377, %v374
    %v417 = vpack.c.b16 %v378, %v375
    %v418 = vpack.c.b16 %v382, %v379
    %v419 = vpack.c.b16 %v383, %v380
    %v420 = vpack.c.b16 %v384, %v381
    %v421 = vpack.c.b16 %v388, %v385
    %v422 = vpack.c.b16 %v389, %v386
    %v423 = vpack.c.b16 %v390, %v387
    %v424 = vpack.c.b16 %v394, %v391
    %v425 = vpack.c.b16 %v395, %v392
    %v426 = vpack.c.b16 %v396, %v393
    %v427 = vpack.c.b16 %v400, %v397
    %v428 = vpack.c.b16 %v401, %v398
    %v429 = vpack.c.b16 %v402, %v399
    %v430 = vpack.c.b16 %v406, %v403
    %v431 = vpack.c.b16 %v407, %v404
    %v432 = vpack.c.b16 %v408, %v405
    %457 = vmatpush.bf16.msra.mxu0 %v430
    %458 = vmatpush.bf16.msra.mxu0 %v427
    %459 = vmatpush.bf16.msra.mxu0 %v424
    %460 = vmatpush.bf16.msra.mxu0 %v421
    %461 = vmatpush.bf16.msra.mxu0 %v418
    %462 = vmatpush.bf16.msra.mxu0 %v415
    %463 = vmatpush.bf16.msra.mxu0 %v412
    %464 = vmatpush.bf16.msra.mxu0 %v409
    %465 = vmatmul.bf16.gmra.mxu0 %v328
    %v466 = vpop.f32.mrf.mxu0
    %v467 = vadd.f32 0.0, %v466
    %v468 = vpop.f32.mrf.mxu0
    %469 = vdwg.mxu0
    %470 = vmatpush.bf16.msra.mxu0 %v431
    %471 = vmatpush.bf16.msra.mxu0 %v428
    %472 = vmatpush.bf16.msra.mxu0 %v425
    %473 = vmatpush.bf16.msra.mxu0 %v422
    %474 = vmatpush.bf16.msra.mxu0 %v419
    %475 = vmatpush.bf16.msra.mxu0 %v416
    %476 = vmatpush.bf16.msra.mxu0 %v413
    %477 = vmatpush.bf16.msra.mxu0 %v410
    %478 = vmatmul.bf16.gmra.mxu0 %v328
    %v479 = vpop.f32.mrf.mxu0
    %v480 = vadd.f32 0.0, %v479
    %v481 = vpop.f32.mrf.mxu0
    %482 = vdwg.mxu0
    %483 = vmatpush.bf16.msra.mxu0 %v432
    %484 = vmatpush.bf16.msra.mxu0 %v429
    %485 = vmatpush.bf16.msra.mxu0 %v426
    %486 = vmatpush.bf16.msra.mxu0 %v423
    %487 = vmatpush.bf16.msra.mxu0 %v420
    %488 = vmatpush.bf16.msra.mxu0 %v417
    %489 = vmatpush.bf16.msra.mxu0 %v414
    %490 = vmatpush.bf16.msra.mxu0 %v411
    %491 = vmatmul.bf16.gmra.mxu0 %v328
    %v492 = vpop.f32.mrf.mxu0
    %v493 = vadd.f32 0.0, %v492
    %v494 = vpop.f32.mrf.mxu0
    %495 = vdwg.mxu0
    %v496 = vadd.f32 %v325, %v467
    %v497 = vxor.u32 %v496, 2147483648
    %v498 = vmul.f32 %v497, 1.442695
    %v499 = vpow.pop %v498
    %v500 = vadd.f32 %v499, 1.0
    %v501 = vrcp.pop %v500
    %v502 = vmul.f32 %v500, %v501
    %v503 = vsub.f32 1.0, %v502
    %v504 = vmul.f32 %v501, %v503
    %v505 = vadd.f32 %v501, %v504
    %vm506 = vweird.f32 %v500
    %vm507 = vweird.f32 %v501
    %vm508 = vmor %vm506, %vm507
    %v509 = vsel %vm508, %v501, %v505
    %v510 = vand.u32 2147483647, %v500
    %vm511 = vcmp.eq.f32.partialorder %v510, 8.507059e+37
    %v512 = vand.u32 %v500, 2147483648
    %v513 = vor.u32 1.1754944e-38, %v512
    %v514 = vsel %vm511, %v513, %v509
    %v515 = vmul.f32 1.0, %v514
    %v516 = vadd.f32 %v326, %v480
    %v517 = vxor.u32 %v516, 2147483648
    %v518 = vmul.f32 %v517, 1.442695
    %v519 = vpow.pop %v518
    %v520 = vadd.f32 %v519, 1.0
    %v521 = vrcp.pop %v520
    %v522 = vmul.f32 %v520, %v521
    %v523 = vsub.f32 1.0, %v522
    %v524 = vmul.f32 %v521, %v523
    %v525 = vadd.f32 %v521, %v524
    %vm526 = vweird.f32 %v520
    %vm527 = vweird.f32 %v521
    %vm528 = vmor %vm526, %vm527
    %v529 = vsel %vm528, %v521, %v525
    %v530 = vand.u32 2147483647, %v520
    %vm531 = vcmp.eq.f32.partialorder %v530, 8.507059e+37
    %v532 = vand.u32 %v520, 2147483648
    %v533 = vor.u32 1.1754944e-38, %v532
    %v534 = vsel %vm531, %v533, %v529
    %v535 = vmul.f32 1.0, %v534
    %v536 = vadd.f32 %v493, %v322
    %v537 = vmul.f32 %v515, %v536
    %v538 = vadd.f32 %v327, %v537
    %v539 = vtanh.pop %v538
    %v540 = vsub.f32 %v324, %v539
    %v541 = vmul.f32 %v535, %v540
    %v542 = vadd.f32 %v539, %v541
    %543 = vst [vmem:[#allocation12] sm:$0xff] %v542
    %s544 = scalar_lea.vmem [#allocation2], 24
    %v545 = vld [vmem:[%s544] sm:$0xff]
    %v546 = vld [vmem:[%s544 + $0x8] sm:$0xff]
    %v547 = vld [vmem:[%s544 + $0x10] sm:$0xff]
    %v548 = vpack.c.bf16 %v542, %v542
    %549 = vmatpush.bf16.msra.mxu0 %v430
    %550 = vmatpush.bf16.msra.mxu0 %v427
    %551 = vmatpush.bf16.msra.mxu0 %v424
    %552 = vmatpush.bf16.msra.mxu0 %v421
    %553 = vmatpush.bf16.msra.mxu0 %v418
    %554 = vmatpush.bf16.msra.mxu0 %v415
    %555 = vmatpush.bf16.msra.mxu0 %v412
    %556 = vmatpush.bf16.msra.mxu0 %v409
    %557 = vmatmul.bf16.gmra.mxu0 %v548
    %v558 = vpop.f32.mrf.mxu0
    %v559 = vadd.f32 0.0, %v558
    %v560 = vpop.f32.mrf.mxu0
    %561 = vdwg.mxu0
    %562 = vmatpush.bf16.msra.mxu0 %v431
    %563 = vmatpush.bf16.msra.mxu0 %v428
    %564 = vmatpush.bf16.msra.mxu0 %v425
    %565 = vmatpush.bf16.msra.mxu0 %v422
    %566 = vmatpush.bf16.msra.mxu0 %v419
    %567 = vmatpush.bf16.msra.mxu0 %v416
    %568 = vmatpush.bf16.msra.mxu0 %v413
    %569 = vmatpush.bf16.msra.mxu0 %v410
    %570 = vmatmul.bf16.gmra.mxu0 %v548
    %v571 = vpop.f32.mrf.mxu0
    %v572 = vadd.f32 0.0, %v571
    %v573 = vpop.f32.mrf.mxu0
    %574 = vdwg.mxu0
    %575 = vmatpush.bf16.msra.mxu0 %v432
    %576 = vmatpush.bf16.msra.mxu0 %v429
    %577 = vmatpush.bf16.msra.mxu0 %v426
    %578 = vmatpush.bf16.msra.mxu0 %v423
    %579 = vmatpush.bf16.msra.mxu0 %v420
    %580 = vmatpush.bf16.msra.mxu0 %v417
    %581 = vmatpush.bf16.msra.mxu0 %v414
    %582 = vmatpush.bf16.msra.mxu0 %v411
    %583 = vmatmul.bf16.gmra.mxu0 %v548
    %v584 = vpop.f32.mrf.mxu0
    %v585 = vadd.f32 0.0, %v584
    %v586 = vpop.f32.mrf.mxu0
    %587 = vdwg.mxu0
    %v588 = vadd.f32 %v545, %v559
    %v589 = vxor.u32 %v588, 2147483648
    %v590 = vmul.f32 %v589, 1.442695
    %v591 = vpow.pop %v590
    %v592 = vadd.f32 %v591, 1.0
    %v593 = vrcp.pop %v592
    %v594 = vmul.f32 %v592, %v593
    %v595 = vsub.f32 1.0, %v594
    %v596 = vmul.f32 %v593, %v595
    %v597 = vadd.f32 %v593, %v596
    %vm598 = vweird.f32 %v592
    %vm599 = vweird.f32 %v593
    %vm600 = vmor %vm598, %vm599
    %v601 = vsel %vm600, %v593, %v597
    %v602 = vand.u32 2147483647, %v592
    %vm603 = vcmp.eq.f32.partialorder %v602, 8.507059e+37
    %v604 = vand.u32 %v592, 2147483648
    %v605 = vor.u32 1.1754944e-38, %v604
    %v606 = vsel %vm603, %v605, %v601
    %v607 = vmul.f32 1.0, %v606
    %v608 = vadd.f32 %v546, %v572
    %v609 = vxor.u32 %v608, 2147483648
    %v610 = vmul.f32 %v609, 1.442695
    %v611 = vpow.pop %v610
    %v612 = vadd.f32 %v611, 1.0
    %v613 = vrcp.pop %v612
    %v614 = vmul.f32 %v612, %v613
    %v615 = vsub.f32 1.0, %v614
    %v616 = vmul.f32 %v613, %v615
    %v617 = vadd.f32 %v613, %v616
    %vm618 = vweird.f32 %v612
    %vm619 = vweird.f32 %v613
    %vm620 = vmor %vm618, %vm619
    %v621 = vsel %vm620, %v613, %v617
    %v622 = vand.u32 2147483647, %v612
    %vm623 = vcmp.eq.f32.partialorder %v622, 8.507059e+37
    %v624 = vand.u32 %v612, 2147483648
    %v625 = vor.u32 1.1754944e-38, %v624
    %v626 = vsel %vm623, %v625, %v621
    %v627 = vmul.f32 1.0, %v626
    %v628 = vadd.f32 %v585, %v322
    %v629 = vmul.f32 %v607, %v628
    %v630 = vadd.f32 %v547, %v629
    %v631 = vtanh.pop %v630
    %v632 = vsub.f32 %v542, %v631
    %v633 = vmul.f32 %v627, %v632
    %v634 = vadd.f32 %v631, %v633
    %s635 = scalar_lea.vmem [#allocation12], 8
    %636 = vst [vmem:[%s635] sm:$0xff] %v634
    %s637 = scalar_lea.vmem [#allocation2], 48
    %v638 = vld [vmem:[%s637] sm:$0xff]
    %v639 = vld [vmem:[%s637 + $0x8] sm:$0xff]
    %v640 = vld [vmem:[%s637 + $0x10] sm:$0xff]
    %v641 = vpack.c.bf16 %v634, %v634
    %642 = vmatpush.bf16.msra.mxu0 %v430
    %643 = vmatpush.bf16.msra.mxu0 %v427
    %644 = vmatpush.bf16.msra.mxu0 %v424
    %645 = vmatpush.bf16.msra.mxu0 %v421
    %646 = vmatpush.bf16.msra.mxu0 %v418
    %647 = vmatpush.bf16.msra.mxu0 %v415
    %648 = vmatpush.bf16.msra.mxu0 %v412
    %649 = vmatpush.bf16.msra.mxu0 %v409
    %650 = vmatmul.bf16.gmra.mxu0 %v641
    %v651 = vpop.f32.mrf.mxu0
    %v652 = vadd.f32 0.0, %v651
    %v653 = vpop.f32.mrf.mxu0
    %654 = vdwg.mxu0
    %655 = vmatpush.bf16.msra.mxu0 %v431
    %656 = vmatpush.bf16.msra.mxu0 %v428
    %657 = vmatpush.bf16.msra.mxu0 %v425
    %658 = vmatpush.bf16.msra.mxu0 %v422
    %659 = vmatpush.bf16.msra.mxu0 %v419
    %660 = vmatpush.bf16.msra.mxu0 %v416
    %661 = vmatpush.bf16.msra.mxu0 %v413
    %662 = vmatpush.bf16.msra.mxu0 %v410
    %663 = vmatmul.bf16.gmra.mxu0 %v641
    %v664 = vpop.f32.mrf.mxu0
    %v665 = vadd.f32 0.0, %v664
    %v666 = vpop.f32.mrf.mxu0
    %667 = vdwg.mxu0
    %668 = vmatpush.bf16.msra.mxu0 %v432
    %669 = vmatpush.bf16.msra.mxu0 %v429
    %670 = vmatpush.bf16.msra.mxu0 %v426
    %671 = vmatpush.bf16.msra.mxu0 %v423
    %672 = vmatpush.bf16.msra.mxu0 %v420
    %673 = vmatpush.bf16.msra.mxu0 %v417
    %674 = vmatpush.bf16.msra.mxu0 %v414
    %675 = vmatpush.bf16.msra.mxu0 %v411
    %676 = vmatmul.bf16.gmra.mxu0 %v641
    %v677 = vpop.f32.mrf.mxu0
    %v678 = vadd.f32 0.0, %v677
    %v679 = vpop.f32.mrf.mxu0
    %680 = vdwg.mxu0
    %v681 = vadd.f32 %v638, %v652
    %v682 = vxor.u32 %v681, 2147483648
    %v683 = vmul.f32 %v682, 1.442695
    %v684 = vpow.pop %v683
    %v685 = vadd.f32 %v684, 1.0
    %v686 = vrcp.pop %v685
    %v687 = vmul.f32 %v685, %v686
    %v688 = vsub.f32 1.0, %v687
    %v689 = vmul.f32 %v686, %v688
    %v690 = vadd.f32 %v686, %v689
    %vm691 = vweird.f32 %v685
    %vm692 = vweird.f32 %v686
    %vm693 = vmor %vm691, %vm692
    %v694 = vsel %vm693, %v686, %v690
    %v695 = vand.u32 2147483647, %v685
    %vm696 = vcmp.eq.f32.partialorder %v695, 8.507059e+37
    %v697 = vand.u32 %v685, 2147483648
    %v698 = vor.u32 1.1754944e-38, %v697
    %v699 = vsel %vm696, %v698, %v694
    %v700 = vmul.f32 1.0, %v699
    %v701 = vadd.f32 %v639, %v665
    %v702 = vxor.u32 %v701, 2147483648
    %v703 = vmul.f32 %v702, 1.442695
    %v704 = vpow.pop %v703
    %v705 = vadd.f32 %v704, 1.0
    %v706 = vrcp.pop %v705
    %v707 = vmul.f32 %v705, %v706
    %v708 = vsub.f32 1.0, %v707
    %v709 = vmul.f32 %v706, %v708
    %v710 = vadd.f32 %v706, %v709
    %vm711 = vweird.f32 %v705
    %vm712 = vweird.f32 %v706
    %vm713 = vmor %vm711, %vm712
    %v714 = vsel %vm713, %v706, %v710
    %v715 = vand.u32 2147483647, %v705
    %vm716 = vcmp.eq.f32.partialorder %v715, 8.507059e+37
    %v717 = vand.u32 %v705, 2147483648
    %v718 = vor.u32 1.1754944e-38, %v717
    %v719 = vsel %vm716, %v718, %v714
    %v720 = vmul.f32 1.0, %v719
    %v721 = vadd.f32 %v678, %v322
    %v722 = vmul.f32 %v700, %v721
    %v723 = vadd.f32 %v640, %v722
    %v724 = vtanh.pop %v723
    %v725 = vsub.f32 %v634, %v724
    %v726 = vmul.f32 %v720, %v725
    %v727 = vadd.f32 %v724, %v726
    %s728 = scalar_lea.vmem [#allocation12], 16
    %729 = vst [vmem:[%s728] sm:$0xff] %v727
    %s730 = scalar_lea.vmem [#allocation2], 72
    %v731 = vld [vmem:[%s730] sm:$0xff]
    %v732 = vld [vmem:[%s730 + $0x8] sm:$0xff]
    %v733 = vld [vmem:[%s730 + $0x10] sm:$0xff]
    %v734 = vpack.c.bf16 %v727, %v727
    %735 = vmatpush.bf16.msra.mxu0 %v430
    %736 = vmatpush.bf16.msra.mxu0 %v427
    %737 = vmatpush.bf16.msra.mxu0 %v424
    %738 = vmatpush.bf16.msra.mxu0 %v421
    %739 = vmatpush.bf16.msra.mxu0 %v418
    %740 = vmatpush.bf16.msra.mxu0 %v415
    %741 = vmatpush.bf16.msra.mxu0 %v412
    %742 = vmatpush.bf16.msra.mxu0 %v409
    %743 = vmatmul.bf16.gmra.mxu0 %v734
    %v744 = vpop.f32.mrf.mxu0
    %v745 = vadd.f32 0.0, %v744
    %v746 = vpop.f32.mrf.mxu0
    %747 = vdwg.mxu0
    %748 = vmatpush.bf16.msra.mxu0 %v431
    %749 = vmatpush.bf16.msra.mxu0 %v428
    %750 = vmatpush.bf16.msra.mxu0 %v425
    %751 = vmatpush.bf16.msra.mxu0 %v422
    %752 = vmatpush.bf16.msra.mxu0 %v419
    %753 = vmatpush.bf16.msra.mxu0 %v416
    %754 = vmatpush.bf16.msra.mxu0 %v413
    %755 = vmatpush.bf16.msra.mxu0 %v410
    %756 = vmatmul.bf16.gmra.mxu0 %v734
    %v757 = vpop.f32.mrf.mxu0
    %v758 = vadd.f32 0.0, %v757
    %v759 = vpop.f32.mrf.mxu0
    %760 = vdwg.mxu0
    %761 = vmatpush.bf16.msra.mxu0 %v432
    %762 = vmatpush.bf16.msra.mxu0 %v429
    %763 = vmatpush.bf16.msra.mxu0 %v426
    %764 = vmatpush.bf16.msra.mxu0 %v423
    %765 = vmatpush.bf16.msra.mxu0 %v420
    %766 = vmatpush.bf16.msra.mxu0 %v417
    %767 = vmatpush.bf16.msra.mxu0 %v414
    %768 = vmatpush.bf16.msra.mxu0 %v411
    %769 = vmatmul.bf16.gmra.mxu0 %v734
    %v770 = vpop.f32.mrf.mxu0
    %v771 = vadd.f32 0.0, %v770
    %v772 = vpop.f32.mrf.mxu0
    %773 = vdwg.mxu0
    %v774 = vadd.f32 %v731, %v745
    %v775 = vxor.u32 %v774, 2147483648
    %v776 = vmul.f32 %v775, 1.442695
    %v777 = vpow.pop %v776
    %v778 = vadd.f32 %v777, 1.0
    %v779 = vrcp.pop %v778
    %v780 = vmul.f32 %v778, %v779
    %v781 = vsub.f32 1.0, %v780
    %v782 = vmul.f32 %v779, %v781
    %v783 = vadd.f32 %v779, %v782
    %vm784 = vweird.f32 %v778
    %vm785 = vweird.f32 %v779
    %vm786 = vmor %vm784, %vm785
    %v787 = vsel %vm786, %v779, %v783
    %v788 = vand.u32 2147483647, %v778
    %vm789 = vcmp.eq.f32.partialorder %v788, 8.507059e+37
    %v790 = vand.u32 %v778, 2147483648
    %v791 = vor.u32 1.1754944e-38, %v790
    %v792 = vsel %vm789, %v791, %v787
    %v793 = vmul.f32 1.0, %v792
    %v794 = vadd.f32 %v732, %v758
    %v795 = vxor.u32 %v794, 2147483648
    %v796 = vmul.f32 %v795, 1.442695
    %v797 = vpow.pop %v796
    %v798 = vadd.f32 %v797, 1.0
    %v799 = vrcp.pop %v798
    %v800 = vmul.f32 %v798, %v799
    %v801 = vsub.f32 1.0, %v800
    %v802 = vmul.f32 %v799, %v801
    %v803 = vadd.f32 %v799, %v802
    %vm804 = vweird.f32 %v798
    %vm805 = vweird.f32 %v799
    %vm806 = vmor %vm804, %vm805
    %v807 = vsel %vm806, %v799, %v803
    %v808 = vand.u32 2147483647, %v798
    %vm809 = vcmp.eq.f32.partialorder %v808, 8.507059e+37
    %v810 = vand.u32 %v798, 2147483648
    %v811 = vor.u32 1.1754944e-38, %v810
    %v812 = vsel %vm809, %v811, %v807
    %v813 = vmul.f32 1.0, %v812
    %v814 = vadd.f32 %v771, %v322
    %v815 = vmul.f32 %v793, %v814
    %v816 = vadd.f32 %v733, %v815
    %v817 = vtanh.pop %v816
    %v818 = vsub.f32 %v727, %v817
    %v819 = vmul.f32 %v813, %v818
    %v820 = vadd.f32 %v817, %v819
    %s821 = scalar_lea.vmem [#allocation12], 24
    %822 = vst [vmem:[%s821] sm:$0xff] %v820
    %s823 = scalar_lea.vmem [#allocation2], 96
    %v824 = vld [vmem:[%s823] sm:$0xff]
    %v825 = vld [vmem:[%s823 + $0x8] sm:$0xff]
    %v826 = vld [vmem:[%s823 + $0x10] sm:$0xff]
    %v827 = vpack.c.bf16 %v820, %v820
    %828 = vmatpush.bf16.msra.mxu0 %v430
    %829 = vmatpush.bf16.msra.mxu0 %v427
    %830 = vmatpush.bf16.msra.mxu0 %v424
    %831 = vmatpush.bf16.msra.mxu0 %v421
    %832 = vmatpush.bf16.msra.mxu0 %v418
    %833 = vmatpush.bf16.msra.mxu0 %v415
    %834 = vmatpush.bf16.msra.mxu0 %v412
    %835 = vmatpush.bf16.msra.mxu0 %v409
    %836 = vmatmul.bf16.gmra.mxu0 %v827
    %v837 = vpop.f32.mrf.mxu0
    %v838 = vadd.f32 0.0, %v837
    %v839 = vpop.f32.mrf.mxu0
    %840 = vdwg.mxu0
    %841 = vmatpush.bf16.msra.mxu0 %v431
    %842 = vmatpush.bf16.msra.mxu0 %v428
    %843 = vmatpush.bf16.msra.mxu0 %v425
    %844 = vmatpush.bf16.msra.mxu0 %v422
    %845 = vmatpush.bf16.msra.mxu0 %v419
    %846 = vmatpush.bf16.msra.mxu0 %v416
    %847 = vmatpush.bf16.msra.mxu0 %v413
    %848 = vmatpush.bf16.msra.mxu0 %v410
    %849 = vmatmul.bf16.gmra.mxu0 %v827
    %v850 = vpop.f32.mrf.mxu0
    %v851 = vadd.f32 0.0, %v850
    %v852 = vpop.f32.mrf.mxu0
    %853 = vdwg.mxu0
    %854 = vmatpush.bf16.msra.mxu0 %v432
    %855 = vmatpush.bf16.msra.mxu0 %v429
    %856 = vmatpush.bf16.msra.mxu0 %v426
    %857 = vmatpush.bf16.msra.mxu0 %v423
    %858 = vmatpush.bf16.msra.mxu0 %v420
    %859 = vmatpush.bf16.msra.mxu0 %v417
    %860 = vmatpush.bf16.msra.mxu0 %v414
    %861 = vmatpush.bf16.msra.mxu0 %v411
    %862 = vmatmul.bf16.gmra.mxu0 %v827
    %v863 = vpop.f32.mrf.mxu0
    %v864 = vadd.f32 0.0, %v863
    %v865 = vpop.f32.mrf.mxu0
    %866 = vdwg.mxu0
    %v867 = vadd.f32 %v824, %v838
    %v868 = vxor.u32 %v867, 2147483648
    %v869 = vmul.f32 %v868, 1.442695
    %v870 = vpow.pop %v869
    %v871 = vadd.f32 %v870, 1.0
    %v872 = vrcp.pop %v871
    %v873 = vmul.f32 %v871, %v872
    %v874 = vsub.f32 1.0, %v873
    %v875 = vmul.f32 %v872, %v874
    %v876 = vadd.f32 %v872, %v875
    %vm877 = vweird.f32 %v871
    %vm878 = vweird.f32 %v872
    %vm879 = vmor %vm877, %vm878
    %v880 = vsel %vm879, %v872, %v876
    %v881 = vand.u32 2147483647, %v871
    %vm882 = vcmp.eq.f32.partialorder %v881, 8.507059e+37
    %v883 = vand.u32 %v871, 2147483648
    %v884 = vor.u32 1.1754944e-38, %v883
    %v885 = vsel %vm882, %v884, %v880
    %v886 = vmul.f32 1.0, %v885
    %v887 = vadd.f32 %v825, %v851
    %v888 = vxor.u32 %v887, 2147483648
    %v889 = vmul.f32 %v888, 1.442695
    %v890 = vpow.pop %v889
    %v891 = vadd.f32 %v890, 1.0
    %v892 = vrcp.pop %v891
    %v893 = vmul.f32 %v891, %v892
    %v894 = vsub.f32 1.0, %v893
    %v895 = vmul.f32 %v892, %v894
    %v896 = vadd.f32 %v892, %v895
    %vm897 = vweird.f32 %v891
    %vm898 = vweird.f32 %v892
    %vm899 = vmor %vm897, %vm898
    %v900 = vsel %vm899, %v892, %v896
    %v901 = vand.u32 2147483647, %v891
    %vm902 = vcmp.eq.f32.partialorder %v901, 8.507059e+37
    %v903 = vand.u32 %v891, 2147483648
    %v904 = vor.u32 1.1754944e-38, %v903
    %v905 = vsel %vm902, %v904, %v900
    %v906 = vmul.f32 1.0, %v905
    %v907 = vadd.f32 %v864, %v322
    %v908 = vmul.f32 %v886, %v907
    %v909 = vadd.f32 %v826, %v908
    %v910 = vtanh.pop %v909
    %v911 = vsub.f32 %v820, %v910
    %v912 = vmul.f32 %v906, %v911
    %v913 = vadd.f32 %v910, %v912
    %s914 = scalar_lea.vmem [#allocation12], 32
    %915 = vst [vmem:[%s914] sm:$0xff] %v913
    %s916 = scalar_lea.vmem [#allocation2], 120
    %v917 = vld [vmem:[%s916] sm:$0xff]
    %v918 = vld [vmem:[%s916 + $0x8] sm:$0xff]
    %v919 = vld [vmem:[%s916 + $0x10] sm:$0xff]
    %v920 = vpack.c.bf16 %v913, %v913
    %921 = vmatpush.bf16.msra.mxu0 %v430
    %922 = vmatpush.bf16.msra.mxu0 %v427
    %923 = vmatpush.bf16.msra.mxu0 %v424
    %924 = vmatpush.bf16.msra.mxu0 %v421
    %925 = vmatpush.bf16.msra.mxu0 %v418
    %926 = vmatpush.bf16.msra.mxu0 %v415
    %927 = vmatpush.bf16.msra.mxu0 %v412
    %928 = vmatpush.bf16.msra.mxu0 %v409
    %929 = vmatmul.bf16.gmra.mxu0 %v920
    %v930 = vpop.f32.mrf.mxu0
    %v931 = vadd.f32 0.0, %v930
    %v932 = vpop.f32.mrf.mxu0
    %933 = vdwg.mxu0
    %934 = vmatpush.bf16.msra.mxu0 %v431
    %935 = vmatpush.bf16.msra.mxu0 %v428
    %936 = vmatpush.bf16.msra.mxu0 %v425
    %937 = vmatpush.bf16.msra.mxu0 %v422
    %938 = vmatpush.bf16.msra.mxu0 %v419
    %939 = vmatpush.bf16.msra.mxu0 %v416
    %940 = vmatpush.bf16.msra.mxu0 %v413
    %941 = vmatpush.bf16.msra.mxu0 %v410
    %942 = vmatmul.bf16.gmra.mxu0 %v920
    %v943 = vpop.f32.mrf.mxu0
    %v944 = vadd.f32 0.0, %v943
    %v945 = vpop.f32.mrf.mxu0
    %946 = vdwg.mxu0
    %947 = vmatpush.bf16.msra.mxu0 %v432
    %948 = vmatpush.bf16.msra.mxu0 %v429
    %949 = vmatpush.bf16.msra.mxu0 %v426
    %950 = vmatpush.bf16.msra.mxu0 %v423
    %951 = vmatpush.bf16.msra.mxu0 %v420
    %952 = vmatpush.bf16.msra.mxu0 %v417
    %953 = vmatpush.bf16.msra.mxu0 %v414
    %954 = vmatpush.bf16.msra.mxu0 %v411
    %955 = vmatmul.bf16.gmra.mxu0 %v920
    %v956 = vpop.f32.mrf.mxu0
    %v957 = vadd.f32 0.0, %v956
    %v958 = vpop.f32.mrf.mxu0
    %959 = vdwg.mxu0
    %v960 = vadd.f32 %v917, %v931
    %v961 = vxor.u32 %v960, 2147483648
    %v962 = vmul.f32 %v961, 1.442695
    %v963 = vpow.pop %v962
    %v964 = vadd.f32 %v963, 1.0
    %v965 = vrcp.pop %v964
    %v966 = vmul.f32 %v964, %v965
    %v967 = vsub.f32 1.0, %v966
    %v968 = vmul.f32 %v965, %v967
    %v969 = vadd.f32 %v965, %v968
    %vm970 = vweird.f32 %v964
    %vm971 = vweird.f32 %v965
    %vm972 = vmor %vm970, %vm971
    %v973 = vsel %vm972, %v965, %v969
    %v974 = vand.u32 2147483647, %v964
    %vm975 = vcmp.eq.f32.partialorder %v974, 8.507059e+37
    %v976 = vand.u32 %v964, 2147483648
    %v977 = vor.u32 1.1754944e-38, %v976
    %v978 = vsel %vm975, %v977, %v973
    %v979 = vmul.f32 1.0, %v978
    %v980 = vadd.f32 %v918, %v944
    %v981 = vxor.u32 %v980, 2147483648
    %v982 = vmul.f32 %v981, 1.442695
    %v983 = vpow.pop %v982
    %v984 = vadd.f32 %v983, 1.0
    %v985 = vrcp.pop %v984
    %v986 = vmul.f32 %v984, %v985
    %v987 = vsub.f32 1.0, %v986
    %v988 = vmul.f32 %v985, %v987
    %v989 = vadd.f32 %v985, %v988
    %vm990 = vweird.f32 %v984
    %vm991 = vweird.f32 %v985
    %vm992 = vmor %vm990, %vm991
    %v993 = vsel %vm992, %v985, %v989
    %v994 = vand.u32 2147483647, %v984
    %vm995 = vcmp.eq.f32.partialorder %v994, 8.507059e+37
    %v996 = vand.u32 %v984, 2147483648
    %v997 = vor.u32 1.1754944e-38, %v996
    %v998 = vsel %vm995, %v997, %v993
    %v999 = vmul.f32 1.0, %v998
    %v1000 = vadd.f32 %v957, %v322
    %v1001 = vmul.f32 %v979, %v1000
    %v1002 = vadd.f32 %v919, %v1001
    %v1003 = vtanh.pop %v1002
    %v1004 = vsub.f32 %v913, %v1003
    %v1005 = vmul.f32 %v999, %v1004
    %v1006 = vadd.f32 %v1003, %v1005
    %s1007 = scalar_lea.vmem [#allocation12], 40
    %1008 = vst [vmem:[%s1007] sm:$0xff] %v1006
    %s1009 = scalar_lea.vmem [#allocation2], 144
    %v1010 = vld [vmem:[%s1009] sm:$0xff]
    %v1011 = vld [vmem:[%s1009 + $0x8] sm:$0xff]
    %v1012 = vld [vmem:[%s1009 + $0x10] sm:$0xff]
    %v1013 = vpack.c.bf16 %v1006, %v1006
    %1014 = vmatpush.bf16.msra.mxu0 %v430
    %1015 = vmatpush.bf16.msra.mxu0 %v427
    %1016 = vmatpush.bf16.msra.mxu0 %v424
    %1017 = vmatpush.bf16.msra.mxu0 %v421
    %1018 = vmatpush.bf16.msra.mxu0 %v418
    %1019 = vmatpush.bf16.msra.mxu0 %v415
    %1020 = vmatpush.bf16.msra.mxu0 %v412
    %1021 = vmatpush.bf16.msra.mxu0 %v409
    %1022 = vmatmul.bf16.gmra.mxu0 %v1013
    %v1023 = vpop.f32.mrf.mxu0
    %v1024 = vadd.f32 0.0, %v1023
    %v1025 = vpop.f32.mrf.mxu0
    %1026 = vdwg.mxu0
    %1027 = vmatpush.bf16.msra.mxu0 %v431
    %1028 = vmatpush.bf16.msra.mxu0 %v428
    %1029 = vmatpush.bf16.msra.mxu0 %v425
    %1030 = vmatpush.bf16.msra.mxu0 %v422
    %1031 = vmatpush.bf16.msra.mxu0 %v419
    %1032 = vmatpush.bf16.msra.mxu0 %v416
    %1033 = vmatpush.bf16.msra.mxu0 %v413
    %1034 = vmatpush.bf16.msra.mxu0 %v410
    %1035 = vmatmul.bf16.gmra.mxu0 %v1013
    %v1036 = vpop.f32.mrf.mxu0
    %v1037 = vadd.f32 0.0, %v1036
    %v1038 = vpop.f32.mrf.mxu0
    %1039 = vdwg.mxu0
    %1040 = vmatpush.bf16.msra.mxu0 %v432
    %1041 = vmatpush.bf16.msra.mxu0 %v429
    %1042 = vmatpush.bf16.msra.mxu0 %v426
    %1043 = vmatpush.bf16.msra.mxu0 %v423
    %1044 = vmatpush.bf16.msra.mxu0 %v420
    %1045 = vmatpush.bf16.msra.mxu0 %v417
    %1046 = vmatpush.bf16.msra.mxu0 %v414
    %1047 = vmatpush.bf16.msra.mxu0 %v411
    %1048 = vmatmul.bf16.gmra.mxu0 %v1013
    %v1049 = vpop.f32.mrf.mxu0
    %v1050 = vadd.f32 0.0, %v1049
    %v1051 = vpop.f32.mrf.mxu0
    %1052 = vdwg.mxu0
    %v1053 = vadd.f32 %v1010, %v1024
    %v1054 = vxor.u32 %v1053, 2147483648
    %v1055 = vmul.f32 %v1054, 1.442695
    %v1056 = vpow.pop %v1055
    %v1057 = vadd.f32 %v1056, 1.0
    %v1058 = vrcp.pop %v1057
    %v1059 = vmul.f32 %v1057, %v1058
    %v1060 = vsub.f32 1.0, %v1059
    %v1061 = vmul.f32 %v1058, %v1060
    %v1062 = vadd.f32 %v1058, %v1061
    %vm1063 = vweird.f32 %v1057
    %vm1064 = vweird.f32 %v1058
    %vm1065 = vmor %vm1063, %vm1064
    %v1066 = vsel %vm1065, %v1058, %v1062
    %v1067 = vand.u32 2147483647, %v1057
    %vm1068 = vcmp.eq.f32.partialorder %v1067, 8.507059e+37
    %v1069 = vand.u32 %v1057, 2147483648
    %v1070 = vor.u32 1.1754944e-38, %v1069
    %v1071 = vsel %vm1068, %v1070, %v1066
    %v1072 = vmul.f32 1.0, %v1071
    %v1073 = vadd.f32 %v1011, %v1037
    %v1074 = vxor.u32 %v1073, 2147483648
    %v1075 = vmul.f32 %v1074, 1.442695
    %v1076 = vpow.pop %v1075
    %v1077 = vadd.f32 %v1076, 1.0
    %v1078 = vrcp.pop %v1077
    %v1079 = vmul.f32 %v1077, %v1078
    %v1080 = vsub.f32 1.0, %v1079
    %v1081 = vmul.f32 %v1078, %v1080
    %v1082 = vadd.f32 %v1078, %v1081
    %vm1083 = vweird.f32 %v1077
    %vm1084 = vweird.f32 %v1078
    %vm1085 = vmor %vm1083, %vm1084
    %v1086 = vsel %vm1085, %v1078, %v1082
    %v1087 = vand.u32 2147483647, %v1077
    %vm1088 = vcmp.eq.f32.partialorder %v1087, 8.507059e+37
    %v1089 = vand.u32 %v1077, 2147483648
    %v1090 = vor.u32 1.1754944e-38, %v1089
    %v1091 = vsel %vm1088, %v1090, %v1086
    %v1092 = vmul.f32 1.0, %v1091
    %v1093 = vadd.f32 %v1050, %v322
    %v1094 = vmul.f32 %v1072, %v1093
    %v1095 = vadd.f32 %v1012, %v1094
    %v1096 = vtanh.pop %v1095
    %v1097 = vsub.f32 %v1006, %v1096
    %v1098 = vmul.f32 %v1092, %v1097
    %v1099 = vadd.f32 %v1096, %v1098
    %s1100 = scalar_lea.vmem [#allocation12], 48
    %1101 = vst [vmem:[%s1100] sm:$0xff] %v1099
    %s1102 = scalar_lea.vmem [#allocation2], 168
    %v1103 = vld [vmem:[%s1102] sm:$0xff]
    %v1104 = vld [vmem:[%s1102 + $0x8] sm:$0xff]
    %v1105 = vld [vmem:[%s1102 + $0x10] sm:$0xff]
    %v1106 = vpack.c.bf16 %v1099, %v1099
    %1107 = vmatpush.bf16.msra.mxu0 %v430
    %1108 = vmatpush.bf16.msra.mxu0 %v427
    %1109 = vmatpush.bf16.msra.mxu0 %v424
    %1110 = vmatpush.bf16.msra.mxu0 %v421
    %1111 = vmatpush.bf16.msra.mxu0 %v418
    %1112 = vmatpush.bf16.msra.mxu0 %v415
    %1113 = vmatpush.bf16.msra.mxu0 %v412
    %1114 = vmatpush.bf16.msra.mxu0 %v409
    %1115 = vmatmul.bf16.gmra.mxu0 %v1106
    %v1116 = vpop.f32.mrf.mxu0
    %v1117 = vadd.f32 0.0, %v1116
    %v1118 = vpop.f32.mrf.mxu0
    %1119 = vdwg.mxu0
    %1120 = vmatpush.bf16.msra.mxu0 %v431
    %1121 = vmatpush.bf16.msra.mxu0 %v428
    %1122 = vmatpush.bf16.msra.mxu0 %v425
    %1123 = vmatpush.bf16.msra.mxu0 %v422
    %1124 = vmatpush.bf16.msra.mxu0 %v419
    %1125 = vmatpush.bf16.msra.mxu0 %v416
    %1126 = vmatpush.bf16.msra.mxu0 %v413
    %1127 = vmatpush.bf16.msra.mxu0 %v410
    %1128 = vmatmul.bf16.gmra.mxu0 %v1106
    %v1129 = vpop.f32.mrf.mxu0
    %v1130 = vadd.f32 0.0, %v1129
    %v1131 = vpop.f32.mrf.mxu0
    %1132 = vdwg.mxu0
    %1133 = vmatpush.bf16.msra.mxu0 %v432
    %1134 = vmatpush.bf16.msra.mxu0 %v429
    %1135 = vmatpush.bf16.msra.mxu0 %v426
    %1136 = vmatpush.bf16.msra.mxu0 %v423
    %1137 = vmatpush.bf16.msra.mxu0 %v420
    %1138 = vmatpush.bf16.msra.mxu0 %v417
    %1139 = vmatpush.bf16.msra.mxu0 %v414
    %1140 = vmatpush.bf16.msra.mxu0 %v411
    %1141 = vmatmul.bf16.gmra.mxu0 %v1106
    %v1142 = vpop.f32.mrf.mxu0
    %v1143 = vadd.f32 0.0, %v1142
    %v1144 = vpop.f32.mrf.mxu0
    %1145 = vdwg.mxu0
    %v1146 = vadd.f32 %v1103, %v1117
    %v1147 = vxor.u32 %v1146, 2147483648
    %v1148 = vmul.f32 %v1147, 1.442695
    %v1149 = vpow.pop %v1148
    %v1150 = vadd.f32 %v1149, 1.0
    %v1151 = vrcp.pop %v1150
    %v1152 = vmul.f32 %v1150, %v1151
    %v1153 = vsub.f32 1.0, %v1152
    %v1154 = vmul.f32 %v1151, %v1153
    %v1155 = vadd.f32 %v1151, %v1154
    %vm1156 = vweird.f32 %v1150
    %vm1157 = vweird.f32 %v1151
    %vm1158 = vmor %vm1156, %vm1157
    %v1159 = vsel %vm1158, %v1151, %v1155
    %v1160 = vand.u32 2147483647, %v1150
    %vm1161 = vcmp.eq.f32.partialorder %v1160, 8.507059e+37
    %v1162 = vand.u32 %v1150, 2147483648
    %v1163 = vor.u32 1.1754944e-38, %v1162
    %v1164 = vsel %vm1161, %v1163, %v1159
    %v1165 = vmul.f32 1.0, %v1164
    %v1166 = vadd.f32 %v1104, %v1130
    %v1167 = vxor.u32 %v1166, 2147483648
    %v1168 = vmul.f32 %v1167, 1.442695
    %v1169 = vpow.pop %v1168
    %v1170 = vadd.f32 %v1169, 1.0
    %v1171 = vrcp.pop %v1170
    %v1172 = vmul.f32 %v1170, %v1171
    %v1173 = vsub.f32 1.0, %v1172
    %v1174 = vmul.f32 %v1171, %v1173
    %v1175 = vadd.f32 %v1171, %v1174
    %vm1176 = vweird.f32 %v1170
    %vm1177 = vweird.f32 %v1171
    %vm1178 = vmor %vm1176, %vm1177
    %v1179 = vsel %vm1178, %v1171, %v1175
    %v1180 = vand.u32 2147483647, %v1170
    %vm1181 = vcmp.eq.f32.partialorder %v1180, 8.507059e+37
    %v1182 = vand.u32 %v1170, 2147483648
    %v1183 = vor.u32 1.1754944e-38, %v1182
    %v1184 = vsel %vm1181, %v1183, %v1179
    %v1185 = vmul.f32 1.0, %v1184
    %v1186 = vadd.f32 %v1143, %v322
    %v1187 = vmul.f32 %v1165, %v1186
    %v1188 = vadd.f32 %v1105, %v1187
    %v1189 = vtanh.pop %v1188
    %v1190 = vsub.f32 %v1099, %v1189
    %v1191 = vmul.f32 %v1185, %v1190
    %v1192 = vadd.f32 %v1189, %v1191
    %s1193 = scalar_lea.vmem [#allocation12], 56
    %1194 = vst [vmem:[%s1193] sm:$0xff] %v1192
    %1195 = vst [vmem:[#allocation3] sm:$0xff] %v1192
    // Predicated region
    $region42: #{tpu_custom_call.1} parent=1 // pred_check
      _
    $region43: #{tpu_custom_call.1} parent=1 // pred_check_branch
      %1197 = sbr.rel (0) target = $region45
    $region44: #{tpu_custom_call.1} parent=1 // pred_region
      %1199 = vsyncadd [#allocation6], 0
      %s1200 = sshll.u32 [#allocation12], 4
      %s1201 = int_to_ptr.vmem [resolvable:$true] %s1200
      %s1202 = sshll.u32 %s5, 4
      %s1203 = int_to_ptr.hbm [resolvable:$true] %s1202
      %1208 = dma.vmem_to_hbm [thread:$0]  %s1201, 1024, %s1203, [#allocation6], 128, 128, 8
    $region45: #{tpu_custom_call.1} parent=1 // pred_fallthru
      _
    // Predicated region
    $region46: #{tpu_custom_call.1} parent=1 // pred_check
      _
    $region47: #{tpu_custom_call.1} parent=1 // pred_check_branch
      %1210 = sbr.rel (0) target = $region49
    $region48: #{tpu_custom_call.1} parent=1 // pred_region
      %1212 = dma.done [#allocation6], 1024
    $region49: #{tpu_custom_call.1} parent=1 // pred_fallthru
      _
    %1213 = vsyncpa [#allocation5], 1
    %1214 = vsyncpa [#allocation8], 1
    %1215 = vsyncpa [#allocation11], 1
    %1216 = vsyncpa [#allocation6], 1

</llo_original>
